<compile_context>
chip_gen: v6e
topology: v6e:2x2x1
jax: 0.10.0
libtpu: 0.0.40
codegen_flags: <defaults>
</compile_context>

<pallas_src>
import functools
import math

import jax
import jax.numpy as jnp
from jax import lax
from jax.experimental import pallas as pl
from jax.experimental.pallas import tpu as pltpu

# ---- model hyper-parameters (small, consistent with the module's __init__) ----
M_ITEM = 128      # dataset.m_item
DIM = 16          # args.emb_dim
HID = 32          # args.hid_dim
MAX_SEQ = 8       # args.max_seq_length
LAYERS = 2        # args.layers
B = 2             # demo batch (kernel scales: grid chunks of up to 16 sequences / step)
L = 8             # sequence length used at call time (== MAX_SEQ)

EPS = 1e-8        # LayerNorm eps (the module passes eps=1e-08 explicitly)

# MXU operand dtype: bf16 operands + f32 accumulation (full MXU rate on v5e/v6e/v7x,
# half the weight DMA bytes).  All elementwise / transcendental math stays f32.
MM_DTYPE = jnp.bfloat16

# vec-slab row indices (per layer), padded to 16 sublanes
V_LN1W, V_LN1B, V_BQ, V_BK, V_BV, V_BO, V_LN2W, V_LN2B, V_B1, V_B2 = range(10)
VEC_ROWS = 16


def _mm(a, b):
    """2-D MXU matmul, bf16 operands, f32 accumulation."""
    return jnp.dot(a.astype(MM_DTYPE), b.astype(MM_DTYPE),
                   preferred_element_type=jnp.float32)


def _bmm(eq, a, b):
    """Batched MXU matmul (per-example attention), bf16 operands, f32 accumulation."""
    return jnp.einsum(eq, a.astype(MM_DTYPE), b.astype(MM_DTYPE),
                      preferred_element_type=jnp.float32)


def _layernorm(x, w, b):
    mu = jnp.mean(x, axis=-1, keepdims=True)
    var = jnp.mean(jnp.square(x - mu), axis=-1, keepdims=True)
    return (x - mu) * lax.rsqrt(var + EPS) * w + b


# ---------------------------------------------------------------------------
# Fully fused forward kernel (one batch chunk per grid step)
# ---------------------------------------------------------------------------
def sasrec_fused_kernel(ids_ref, tgt_ref, emb_up_ref, w_head_ref, b_head_ref, pos_ref,
                        wq_ref, wk_ref, wv_ref, wo_ref, w1_ref, w2_ref,
                        vec_ref, lastln_ref,
                        logits_ref, loss_ref, *, sqrt_dim):
    f32 = jnp.float32
    BLt = ids_ref.shape[0]                 # B_tile * L flattened positions
    Bt = tgt_ref.shape[0]
    Ls = BLt // Bt
    M, H = emb_up_ref.shape
    nlayers = wq_ref.shape[0]
    inv_sqrt_h = 1.0 / math.sqrt(H)        # single head: head_dim == H

    # ---- fused item-gather + up_emb + bias: one-hot(ids) @ (emb @ up_w + up_b) ----
    ids = ids_ref[...]                                             # (BLt, 1) int32
    item_col = lax.broadcasted_iota(jnp.int32, (BLt, M), 1)
    onehot = (item_col == ids).astype(MM_DTYPE)                    # exact 0/1 in bf16
    x = jnp.dot(onehot, emb_up_ref[...], preferred_element_type=f32)   # (BLt, H) f32

    # ---- scale + positional embedding (emb_dropout == identity) ----
    x = x * sqrt_dim + pos_ref[...]                                # plain VPU add

    # timeline mask: the reference aliases `seqs = log_seq` and updates it in place
    # before testing `log_seq == 0`, so the mask is elementwise on the scaled +
    # pos-embedded activation (faithful to the PyTorch module's aliasing quirk).
    keep = (x != 0.0).astype(f32)                                  # (BLt, H)
    x = x * keep

    # one (1, L, L) causal mask shared by every example and every layer
    rows = lax.broadcasted_iota(jnp.int32, (1, Ls, Ls), 1)
    cols = lax.broadcasted_iota(jnp.int32, (1, Ls, Ls), 2)
    causal = cols <= rows

    def layer_body(i, x_cur):
        vecs = vec_ref[i]                                          # (16, H) f32 packed vectors
        ln1w, ln1b = vecs[V_LN1W:V_LN1W + 1], vecs[V_LN1B:V_LN1B + 1]
        bq, bk = vecs[V_BQ:V_BQ + 1], vecs[V_BK:V_BK + 1]
        bv, bo = vecs[V_BV:V_BV + 1], vecs[V_BO:V_BO + 1]
        ln2w, ln2b = vecs[V_LN2W:V_LN2W + 1], vecs[V_LN2B:V_LN2B + 1]
        b1, b2 = vecs[V_B1:V_B1 + 1], vecs[V_B2:V_B2 + 1]

        # Q = attention_layernorm(seqs); K = V = seqs (pre-norm), as in the module.
        q_in = _layernorm(x_cur, ln1w, ln1b)                       # f32
        q = _mm(q_in, wq_ref[i]) + bq                              # lane-clean separate slabs
        k = _mm(x_cur, wk_ref[i]) + bk
        v = _mm(x_cur, wv_ref[i]) + bv

        # per-example single-head attention: (Bt, L, L) scores, scores/softmax in f32
        q3 = q.reshape(Bt, Ls, H)
        k3 = k.reshape(Bt, Ls, H)
        v3 = v.reshape(Bt, Ls, H)
        s = _bmm('bqh,bkh->bqk', q3, k3) * inv_sqrt_h
        s = jnp.where(causal, s, jnp.float32(-1e30))
        smax = jnp.max(s, axis=-1, keepdims=True)
        p = jnp.exp(s - smax)
        attn = p / jnp.sum(p, axis=-1, keepdims=True)              # masked cols -> exactly 0
        ctx = _bmm('bqk,bkh->bqh', attn, v3).reshape(BLt, H)

        mha = _mm(ctx, wo_ref[i]) + bo                             # attention out-projection
        x2 = q_in + mha                                            # seqs = Q + mha_outputs
        x3 = _layernorm(x2, ln2w, ln2b)                            # forward_layernorm

        # 1x1-conv FFN == per-position linear -> ReLU -> linear (dropouts identity)
        h = jnp.maximum(_mm(x3, w1_ref[i]) + b1, 0.0)
        res = _mm(h, w2_ref[i]) + b2
        return (x3 + res) * keep                                   # residual + timeline mask

    x = lax.fori_loop(0, nlayers, layer_body, x, unroll=True)

    # ---- head: last position -> last LayerNorm -> fused (down_emb @ emb^T) logits ----
    last = x.reshape(Bt, Ls, H)[:, Ls - 1, :]                      # (Bt, H)
    ll = lastln_ref[...]                                           # (2, H): [w; b]
    last_n = _layernorm(last, ll[0:1], ll[1:2])
    logits = _mm(last_n, w_head_ref[...]) + b_head_ref[...]        # (Bt, M) lane-dense
    logits_ref[...] = logits

    # per-example cross-entropy (NLL); the batch mean is a tiny wrapper epilogue
    tgt = tgt_ref[...]                                             # (Bt, 1) int32
    tgt_oh = (lax.broadcasted_iota(jnp.int32, (Bt, M), 1) == tgt).astype(f32)
    mx = jnp.max(logits, axis=-1, keepdims=True)
    lse = mx + jnp.log(jnp.sum(jnp.exp(logits - mx), axis=-1, keepdims=True))
    picked = jnp.sum(logits * tgt_oh, axis=-1, keepdims=True)
    loss_ref[...] = lse - picked                                   # (Bt, 1)


# ---------------------------------------------------------------------------
# Full forward (mirrors SASRec.forward) -- one fused pallas_call
# ---------------------------------------------------------------------------
@jax.jit
def sasrec_forward(seq_ids, pos_ids, params):
    Bn, Ls = seq_ids.shape
    m_item, hid = params["emb_up"].shape
    nlayers = params["wq"].shape[0]

    # batch chunking: one grid step per chunk (parallel axis -> uses both v7x TensorCores
    # once the batch is scaled; at B=2 this is a single grid step).
    b_tile = Bn if Bn <= 16 else 16
    assert Bn % b_tile == 0, "batch must be a multiple of the batch tile"
    n_chunks = Bn // b_tile

    ids_flat = seq_ids.reshape(Bn * Ls, 1).astype(jnp.int32)
    tgt = pos_ids.reshape(Bn, 1).astype(jnp.int32)
    # positional slab tiled once host-side (broadcast-style VPU add in-kernel)
    pos_slab = jnp.tile(params["pos_emb"][:Ls], (b_tile, 1))       # (b_tile*L, H) f32

    def whole(nd):
        return lambda i: (0,) * nd

    in_specs = [
        pl.BlockSpec((b_tile * Ls, 1), lambda i: (i, 0)),          # ids (chunked)
        pl.BlockSpec((b_tile, 1), lambda i: (i, 0)),               # targets (chunked)
        pl.BlockSpec((m_item, hid), whole(2)),                     # emb @ up_w + up_b   (bf16)
        pl.BlockSpec((hid, m_item), whole(2)),                     # down_w @ emb^T      (bf16)
        pl.BlockSpec((1, m_item), whole(2)),                       # down_b @ emb^T      (f32)
        pl.BlockSpec((b_tile * Ls, hid), whole(2)),                # positional slab     (f32)
        pl.BlockSpec((nlayers, hid, hid), whole(3)),               # Wq  (bf16)
        pl.BlockSpec((nlayers, hid, hid), whole(3)),               # Wk  (bf16)
        pl.BlockSpec((nlayers, hid, hid), whole(3)),               # Wv  (bf16)
        pl.BlockSpec((nlayers, hid, hid), whole(3)),               # Wo  (bf16)
        pl.BlockSpec((nlayers, hid, hid), whole(3)),               # W1  (bf16)
        pl.BlockSpec((nlayers, hid, hid), whole(3)),               # W2  (bf16)
        pl.BlockSpec((nlayers, VEC_ROWS, hid), whole(3)),          # LN params + biases  (f32)
        pl.BlockSpec((2, hid), whole(2)),                          # last LayerNorm      (f32)
    ]
    out_specs = (
        pl.BlockSpec((b_tile, m_item), lambda i: (i, 0)),          # logits (lane-dense, M=128)
        pl.BlockSpec((b_tile, 1), lambda i: (i, 0)),               # per-example NLL
    )

    logits, nll = pl.pallas_call(
        functools.partial(sasrec_fused_kernel, sqrt_dim=math.sqrt(DIM)),
        out_shape=(jax.ShapeDtypeStruct((Bn, m_item), jnp.float32),
                   jax.ShapeDtypeStruct((Bn, 1), jnp.float32)),
        grid=(n_chunks,),
        in_specs=in_specs,
        out_specs=out_specs,
        # VMEM footprint is tiny here; set vmem_limit_bytes explicitly if b_tile/M are scaled up.
        compiler_params=pltpu.CompilerParams(
            dimension_semantics=("parallel",)),
    )(ids_flat, tgt,
      params["emb_up"], params["w_head"], params["b_head"], pos_slab,
      params["wq"], params["wk"], params["wv"],
      params["wo"], params["w1"], params["w2"],
      params["vec_slab"], params["last_ln"])

    return jnp.mean(nll), logits


# ---------------------------------------------------------------------------
# Deterministic parameter init (shapes from the module's __init__), pre-packed /
# pre-fused into the layout the fused kernel consumes.  If weights were trained,
# the two fused products (emb_up, w_head/b_head) are one tiny matmul to recompute
# per step outside the kernel.
# ---------------------------------------------------------------------------
def init_params(key):
    keys = jax.random.split(key, 64)
    kit = iter(keys)

    def nrm(shape, scale=0.05):
        return jax.random.normal(next(kit), shape, jnp.float32) * scale

    ones = jnp.ones((1, HID), jnp.float32)
    zeros = jnp.zeros((1, HID), jnp.float32)

    emb = nrm((M_ITEM, DIM), 0.1)
    up_w, up_b = nrm((DIM, HID)), nrm((1, HID), 0.01)
    down_w, down_b = nrm((HID, DIM)), nrm((1, DIM), 0.01)
    pos_emb = nrm((MAX_SEQ, HID), 0.1)

    # pre-fused linear chains (computed in f32, MXU operands stored in bf16)
    emb_up = (emb @ up_w + up_b).astype(MM_DTYPE)        # (M, H): embedding -> up_emb fused
    w_head = (down_w @ emb.T).astype(MM_DTYPE)           # (H, M): down_emb -> logits fused
    b_head = down_b @ emb.T                              # (1, M) f32

    wq, wk, wv, wo, w1, w2, vecs = ([] for _ in range(7))
    for _ in range(LAYERS):
        wq.append(nrm((HID, HID)))
        wk.append(nrm((HID, HID)))
        wv.append(nrm((HID, HID)))
        wo.append(nrm((HID, HID)))
        w1.append(nrm((HID, HID)))
        w2.append(nrm((HID, HID)))
        vecs.append(jnp.concatenate(
            [ones, zeros,                                          # ln1 w, b
             nrm((1, HID), 0.01), nrm((1, HID), 0.01),             # bq, bk
             nrm((1, HID), 0.01), nrm((1, HID), 0.01),             # bv, bo
             ones, zeros,                                          # ln2 w, b
             nrm((1, HID), 0.01), nrm((1, HID), 0.01)]             # b1, b2
            + [zeros] * (VEC_ROWS - 10), axis=0))                  # pad -> (16, H)

    stack_bf16 = lambda xs: jnp.stack(xs).astype(MM_DTYPE)
    return {
        "emb_up": emb_up, "w_head": w_head, "b_head": b_head,
        "pos_emb": pos_emb,
        "last_ln": jnp.concatenate([ones, zeros], axis=0),         # (2, H): [w; b]
        "wq": stack_bf16(wq), "wk": stack_bf16(wk), "wv": stack_bf16(wv),
        "wo": stack_bf16(wo), "w1": stack_bf16(w1), "w2": stack_bf16(w2),
        "vec_slab": jnp.stack(vecs),                               # (LAYERS, 16, H) f32
    }


if __name__ == "__main__":
    key = jax.random.PRNGKey(0)
    pkey, skey, lkey = jax.random.split(key, 3)
    params = init_params(pkey)

    seq_ids = jax.random.randint(skey, (B, L), 1, M_ITEM, dtype=jnp.int32)   # item-id sequence
    pos_ids = jax.random.randint(lkey, (B, 1), 1, M_ITEM, dtype=jnp.int32)   # target items

    loss, logits = sasrec_forward(seq_ids, pos_ids, params)
    jax.block_until_ready(loss)
    jax.block_until_ready(logits)
    print("KERNEL_OK")
</pallas_src>

<mosaic_0001>
module attributes {stable_mosaic.version = 11 : i64} {
  func.func @sasrec_fused_kernel(%arg0: i32, %arg1: memref<16x1xi32, #tpu.memory_space<vmem>>, %arg2: memref<2x1xi32, #tpu.memory_space<vmem>>, %arg3: memref<128x32xbf16, #tpu.memory_space<vmem>>, %arg4: memref<32x128xbf16, #tpu.memory_space<vmem>>, %arg5: memref<1x128xf32, #tpu.memory_space<vmem>>, %arg6: memref<16x32xf32, #tpu.memory_space<vmem>>, %arg7: memref<2x32x32xbf16, #tpu.memory_space<vmem>>, %arg8: memref<2x32x32xbf16, #tpu.memory_space<vmem>>, %arg9: memref<2x32x32xbf16, #tpu.memory_space<vmem>>, %arg10: memref<2x32x32xbf16, #tpu.memory_space<vmem>>, %arg11: memref<2x32x32xbf16, #tpu.memory_space<vmem>>, %arg12: memref<2x32x32xbf16, #tpu.memory_space<vmem>>, %arg13: memref<2x16x32xf32, #tpu.memory_space<vmem>>, %arg14: memref<2x32xf32, #tpu.memory_space<vmem>>, %arg15: memref<2x128xf32, #tpu.memory_space<vmem>>, %arg16: memref<2x1xf32, #tpu.memory_space<vmem>>) attributes {dimension_semantics = [#tpu.dimension_semantics<parallel>], iteration_bounds = array<i64: 1>, scalar_prefetch = 0 : i64, scratch_operands = 0 : i64, tpu.core_type = #tpu.core_type<tc>, window_params = [{transform_indices = @transform_0, window_bounds = array<i64: 16, 1>}, {transform_indices = @transform_1, window_bounds = array<i64: 2, 1>}, {pipeline_mode = #tpu.pipeline_mode<synchronous>, transform_indices = @transform_2, window_bounds = array<i64: 128, 32>}, {pipeline_mode = #tpu.pipeline_mode<synchronous>, transform_indices = @transform_3, window_bounds = array<i64: 32, 128>}, {pipeline_mode = #tpu.pipeline_mode<synchronous>, transform_indices = @transform_4, window_bounds = array<i64: 1, 128>}, {pipeline_mode = #tpu.pipeline_mode<synchronous>, transform_indices = @transform_5, window_bounds = array<i64: 16, 32>}, {pipeline_mode = #tpu.pipeline_mode<synchronous>, transform_indices = @transform_6, window_bounds = array<i64: 2, 32, 32>}, {pipeline_mode = #tpu.pipeline_mode<synchronous>, transform_indices = @transform_7, window_bounds = array<i64: 2, 32, 32>}, {pipeline_mode = #tpu.pipeline_mode<synchronous>, transform_indices = @transform_8, window_bounds = array<i64: 2, 32, 32>}, {pipeline_mode = #tpu.pipeline_mode<synchronous>, transform_indices = @transform_9, window_bounds = array<i64: 2, 32, 32>}, {pipeline_mode = #tpu.pipeline_mode<synchronous>, transform_indices = @transform_10, window_bounds = array<i64: 2, 32, 32>}, {pipeline_mode = #tpu.pipeline_mode<synchronous>, transform_indices = @transform_11, window_bounds = array<i64: 2, 32, 32>}, {pipeline_mode = #tpu.pipeline_mode<synchronous>, transform_indices = @transform_12, window_bounds = array<i64: 2, 16, 32>}, {pipeline_mode = #tpu.pipeline_mode<synchronous>, transform_indices = @transform_13, window_bounds = array<i64: 2, 32>}, {transform_indices = @transform_14, window_bounds = array<i64: 2, 128>}, {transform_indices = @transform_15, window_bounds = array<i64: 2, 1>}]} {
    %c0 = arith.constant 0 : index
    %c0_0 = arith.constant 0 : index
    %0 = vector.load %arg1[%c0, %c0_0] : memref<16x1xi32, #tpu.memory_space<vmem>>, vector<16x1xi32>
    %1 = tpu.iota {dimensions = array<i32: 1>} : vector<16x128xi32>
    %2 = vector.broadcast %0 : vector<16x1xi32> to vector<16x128xi32>
    %3 = arith.cmpi eq, %1, %2 : vector<16x128xi32>
    %4 = arith.extui %3 : vector<16x128xi1> to vector<16x128xi32>
    %5 = arith.sitofp %4 : vector<16x128xi32> to vector<16x128xf32>
    %6 = arith.truncf %5 : vector<16x128xf32> to vector<16x128xbf16>
    %c0_1 = arith.constant 0 : index
    %c0_2 = arith.constant 0 : index
    %7 = vector.load %arg3[%c0_1, %c0_2] : memref<128x32xbf16, #tpu.memory_space<vmem>>, vector<128x32xbf16>
    %cst = arith.constant dense<0.000000e+00> : vector<16x32xf32>
    %8 = tpu.matmul %6, %7, %cst {dimension_numbers = #tpu.dot_dimension_numbers<[1], [0], [0], [1], [0, 0, 1, 1], [], []>} : vector<16x128xbf16>, vector<128x32xbf16>, vector<16x32xf32> -> vector<16x32xf32>
    %cst_3 = arith.constant 4.000000e+00 : f32
    %9 = vector.broadcast %cst_3 : f32 to vector<16x32xf32>
    %10 = arith.mulf %8, %9 : vector<16x32xf32>
    %c0_4 = arith.constant 0 : index
    %c0_5 = arith.constant 0 : index
    %11 = vector.load %arg6[%c0_4, %c0_5] : memref<16x32xf32, #tpu.memory_space<vmem>>, vector<16x32xf32>
    %12 = arith.addf %10, %11 : vector<16x32xf32>
    %cst_6 = arith.constant 0.000000e+00 : f32
    %13 = vector.broadcast %cst_6 : f32 to vector<16x32xf32>
    %14 = arith.cmpf one, %12, %13 : vector<16x32xf32>
    %15 = arith.extui %14 : vector<16x32xi1> to vector<16x32xi32>
    %16 = arith.sitofp %15 : vector<16x32xi32> to vector<16x32xf32>
    %17 = arith.mulf %12, %16 : vector<16x32xf32>
    %18 = tpu.iota {dimensions = array<i32: 1>} : vector<1x8x8xi32>
    %19 = tpu.iota {dimensions = array<i32: 2>} : vector<1x8x8xi32>
    %20 = arith.cmpi sle, %19, %18 : vector<1x8x8xi32>
    %c0_i32 = arith.constant 0 : i32
    %21 = arith.index_cast %c0_i32 : i32 to index
    %c0_7 = arith.constant 0 : index
    %c0_8 = arith.constant 0 : index
    %22 = vector.load %arg13[%21, %c0_7, %c0_8] : memref<2x16x32xf32, #tpu.memory_space<vmem>>, vector<1x16x32xf32>
    %23 = vector.shape_cast %22 : vector<1x16x32xf32> to vector<16x32xf32>
    %24 = vector.extract_strided_slice %23 {offsets = [0, 0], sizes = [1, 32], strides = [1, 1]} : vector<16x32xf32> to vector<1x32xf32>
    %25 = vector.extract_strided_slice %23 {offsets = [1, 0], sizes = [1, 32], strides = [1, 1]} : vector<16x32xf32> to vector<1x32xf32>
    %26 = vector.extract_strided_slice %23 {offsets = [2, 0], sizes = [1, 32], strides = [1, 1]} : vector<16x32xf32> to vector<1x32xf32>
    %27 = vector.extract_strided_slice %23 {offsets = [3, 0], sizes = [1, 32], strides = [1, 1]} : vector<16x32xf32> to vector<1x32xf32>
    %28 = vector.extract_strided_slice %23 {offsets = [4, 0], sizes = [1, 32], strides = [1, 1]} : vector<16x32xf32> to vector<1x32xf32>
    %29 = vector.extract_strided_slice %23 {offsets = [5, 0], sizes = [1, 32], strides = [1, 1]} : vector<16x32xf32> to vector<1x32xf32>
    %30 = vector.extract_strided_slice %23 {offsets = [6, 0], sizes = [1, 32], strides = [1, 1]} : vector<16x32xf32> to vector<1x32xf32>
    %31 = vector.extract_strided_slice %23 {offsets = [7, 0], sizes = [1, 32], strides = [1, 1]} : vector<16x32xf32> to vector<1x32xf32>
    %32 = vector.extract_strided_slice %23 {offsets = [8, 0], sizes = [1, 32], strides = [1, 1]} : vector<16x32xf32> to vector<1x32xf32>
    %33 = vector.extract_strided_slice %23 {offsets = [9, 0], sizes = [1, 32], strides = [1, 1]} : vector<16x32xf32> to vector<1x32xf32>
    %cst_9 = arith.constant dense<0.000000e+00> : vector<16xf32>
    %34 = vector.multi_reduction <add>, %17, %cst_9 [1] : vector<16x32xf32> to vector<16xf32>
    %35 = vector.shape_cast %34 : vector<16xf32> to vector<16x1xf32>
    %cst_10 = arith.constant 3.200000e+01 : f32
    %36 = vector.broadcast %cst_10 : f32 to vector<16x1xf32>
    %37 = arith.divf %35, %36 : vector<16x1xf32>
    %38 = vector.broadcast %37 : vector<16x1xf32> to vector<16x32xf32>
    %39 = arith.subf %17, %38 : vector<16x32xf32>
    %40 = arith.mulf %39, %39 : vector<16x32xf32>
    %cst_11 = arith.constant dense<0.000000e+00> : vector<16xf32>
    %41 = vector.multi_reduction <add>, %40, %cst_11 [1] : vector<16x32xf32> to vector<16xf32>
    %42 = vector.shape_cast %41 : vector<16xf32> to vector<16x1xf32>
    %cst_12 = arith.constant 3.200000e+01 : f32
    %43 = vector.broadcast %cst_12 : f32 to vector<16x1xf32>
    %44 = arith.divf %42, %43 : vector<16x1xf32>
    %45 = vector.broadcast %37 : vector<16x1xf32> to vector<16x32xf32>
    %46 = arith.subf %17, %45 : vector<16x32xf32>
    %cst_13 = arith.constant 9.99999993E-9 : f32
    %47 = vector.broadcast %cst_13 : f32 to vector<16x1xf32>
    %48 = arith.addf %44, %47 : vector<16x1xf32>
    %49 = math.rsqrt %48 : vector<16x1xf32>
    %50 = vector.broadcast %49 : vector<16x1xf32> to vector<16x32xf32>
    %51 = arith.mulf %46, %50 : vector<16x32xf32>
    %52 = vector.broadcast %24 : vector<1x32xf32> to vector<16x32xf32>
    %53 = arith.mulf %51, %52 : vector<16x32xf32>
    %54 = vector.broadcast %25 : vector<1x32xf32> to vector<16x32xf32>
    %55 = arith.addf %53, %54 : vector<16x32xf32>
    %56 = arith.index_cast %c0_i32 : i32 to index
    %c0_14 = arith.constant 0 : index
    %c0_15 = arith.constant 0 : index
    %57 = vector.load %arg7[%56, %c0_14, %c0_15] : memref<2x32x32xbf16, #tpu.memory_space<vmem>>, vector<1x32x32xbf16>
    %58 = vector.shape_cast %57 : vector<1x32x32xbf16> to vector<32x32xbf16>
    %59 = arith.truncf %55 : vector<16x32xf32> to vector<16x32xbf16>
    %cst_16 = arith.constant dense<0.000000e+00> : vector<16x32xf32>
    %60 = tpu.matmul %59, %58, %cst_16 {dimension_numbers = #tpu.dot_dimension_numbers<[1], [0], [0], [1], [0, 0, 1, 1], [], []>} : vector<16x32xbf16>, vector<32x32xbf16>, vector<16x32xf32> -> vector<16x32xf32>
    %61 = vector.broadcast %26 : vector<1x32xf32> to vector<16x32xf32>
    %62 = arith.addf %60, %61 : vector<16x32xf32>
    %63 = arith.index_cast %c0_i32 : i32 to index
    %c0_17 = arith.constant 0 : index
    %c0_18 = arith.constant 0 : index
    %64 = vector.load %arg8[%63, %c0_17, %c0_18] : memref<2x32x32xbf16, #tpu.memory_space<vmem>>, vector<1x32x32xbf16>
    %65 = vector.shape_cast %64 : vector<1x32x32xbf16> to vector<32x32xbf16>
    %66 = arith.truncf %17 : vector<16x32xf32> to vector<16x32xbf16>
    %cst_19 = arith.constant dense<0.000000e+00> : vector<16x32xf32>
    %67 = tpu.matmul %66, %65, %cst_19 {dimension_numbers = #tpu.dot_dimension_numbers<[1], [0], [0], [1], [0, 0, 1, 1], [], []>} : vector<16x32xbf16>, vector<32x32xbf16>, vector<16x32xf32> -> vector<16x32xf32>
    %68 = vector.broadcast %27 : vector<1x32xf32> to vector<16x32xf32>
    %69 = arith.addf %67, %68 : vector<16x32xf32>
    %70 = arith.index_cast %c0_i32 : i32 to index
    %c0_20 = arith.constant 0 : index
    %c0_21 = arith.constant 0 : index
    %71 = vector.load %arg9[%70, %c0_20, %c0_21] : memref<2x32x32xbf16, #tpu.memory_space<vmem>>, vector<1x32x32xbf16>
    %72 = vector.shape_cast %71 : vector<1x32x32xbf16> to vector<32x32xbf16>
    %73 = arith.truncf %17 : vector<16x32xf32> to vector<16x32xbf16>
    %cst_22 = arith.constant dense<0.000000e+00> : vector<16x32xf32>
    %74 = tpu.matmul %73, %72, %cst_22 {dimension_numbers = #tpu.dot_dimension_numbers<[1], [0], [0], [1], [0, 0, 1, 1], [], []>} : vector<16x32xbf16>, vector<32x32xbf16>, vector<16x32xf32> -> vector<16x32xf32>
    %75 = vector.broadcast %28 : vector<1x32xf32> to vector<16x32xf32>
    %76 = arith.addf %74, %75 : vector<16x32xf32>
    %77 = vector.shape_cast %62 : vector<16x32xf32> to vector<2x8x32xf32>
    %78 = vector.shape_cast %69 : vector<16x32xf32> to vector<2x8x32xf32>
    %79 = vector.shape_cast %76 : vector<16x32xf32> to vector<2x8x32xf32>
    %80 = arith.truncf %77 : vector<2x8x32xf32> to vector<2x8x32xbf16>
    %81 = arith.truncf %78 : vector<2x8x32xf32> to vector<2x8x32xbf16>
    "tpu.trace_start"() <{level = 10 : i32, message = "bqh,bkh->bqk"}> : () -> ()
    %cst_23 = arith.constant dense<0.000000e+00> : vector<2x8x8xf32>
    %82 = tpu.matmul %80, %81, %cst_23 {dimension_numbers = #tpu.dot_dimension_numbers<[2], [2], [1], [1], [0, 0, 0, 1, 1, 1], [0], [0]>} : vector<2x8x32xbf16>, vector<2x8x32xbf16>, vector<2x8x8xf32> -> vector<2x8x8xf32>
    "tpu.trace_stop"() : () -> ()
    %cst_24 = arith.constant 0.176776692 : f32
    %83 = vector.broadcast %cst_24 : f32 to vector<2x8x8xf32>
    %84 = arith.mulf %82, %83 : vector<2x8x8xf32>
    %cst_25 = arith.constant -1.000000e+30 : f32
    %85 = vector.shape_cast %20 : vector<1x8x8xi1> to vector<1x8x8xi1>
    %86 = vector.broadcast %85 : vector<1x8x8xi1> to vector<2x8x8xi1>
    %87 = vector.broadcast %cst_25 : f32 to vector<2x8x8xf32>
    %88 = arith.select %86, %84, %87 : vector<2x8x8xi1>, vector<2x8x8xf32>
    %cst_26 = arith.constant dense<0xFF800000> : vector<2x8xf32>
    %89 = vector.multi_reduction <maximumf>, %88, %cst_26 [2] : vector<2x8x8xf32> to vector<2x8xf32>
    %90 = vector.shape_cast %89 : vector<2x8xf32> to vector<2x8x1xf32>
    %91 = vector.broadcast %90 : vector<2x8x1xf32> to vector<2x8x8xf32>
    %92 = arith.subf %88, %91 : vector<2x8x8xf32>
    %93 = math.exp %92 : vector<2x8x8xf32>
    %cst_27 = arith.constant dense<0.000000e+00> : vector<2x8xf32>
    %94 = vector.multi_reduction <add>, %93, %cst_27 [2] : vector<2x8x8xf32> to vector<2x8xf32>
    %95 = vector.shape_cast %94 : vector<2x8xf32> to vector<2x8x1xf32>
    %96 = vector.broadcast %95 : vector<2x8x1xf32> to vector<2x8x8xf32>
    %97 = arith.divf %93, %96 : vector<2x8x8xf32>
    %98 = arith.truncf %97 : vector<2x8x8xf32> to vector<2x8x8xbf16>
    %99 = arith.truncf %79 : vector<2x8x32xf32> to vector<2x8x32xbf16>
    "tpu.trace_start"() <{level = 10 : i32, message = "bqk,bkh->bqh"}> : () -> ()
    %cst_28 = arith.constant dense<0.000000e+00> : vector<2x8x32xf32>
    %100 = tpu.matmul %98, %99, %cst_28 {dimension_numbers = #tpu.dot_dimension_numbers<[2], [1], [1], [2], [0, 0, 0, 1, 1, 2], [0], [0]>} : vector<2x8x8xbf16>, vector<2x8x32xbf16>, vector<2x8x32xf32> -> vector<2x8x32xf32>
    "tpu.trace_stop"() : () -> ()
    %101 = vector.shape_cast %100 : vector<2x8x32xf32> to vector<16x32xf32>
    %102 = arith.index_cast %c0_i32 : i32 to index
    %c0_29 = arith.constant 0 : index
    %c0_30 = arith.constant 0 : index
    %103 = vector.load %arg10[%102, %c0_29, %c0_30] : memref<2x32x32xbf16, #tpu.memory_space<vmem>>, vector<1x32x32xbf16>
    %104 = vector.shape_cast %103 : vector<1x32x32xbf16> to vector<32x32xbf16>
    %105 = arith.truncf %101 : vector<16x32xf32> to vector<16x32xbf16>
    %cst_31 = arith.constant dense<0.000000e+00> : vector<16x32xf32>
    %106 = tpu.matmul %105, %104, %cst_31 {dimension_numbers = #tpu.dot_dimension_numbers<[1], [0], [0], [1], [0, 0, 1, 1], [], []>} : vector<16x32xbf16>, vector<32x32xbf16>, vector<16x32xf32> -> vector<16x32xf32>
    %107 = vector.broadcast %29 : vector<1x32xf32> to vector<16x32xf32>
    %108 = arith.addf %106, %107 : vector<16x32xf32>
    %109 = arith.addf %55, %108 : vector<16x32xf32>
    %cst_32 = arith.constant dense<0.000000e+00> : vector<16xf32>
    %110 = vector.multi_reduction <add>, %109, %cst_32 [1] : vector<16x32xf32> to vector<16xf32>
    %111 = vector.shape_cast %110 : vector<16xf32> to vector<16x1xf32>
    %cst_33 = arith.constant 3.200000e+01 : f32
    %112 = vector.broadcast %cst_33 : f32 to vector<16x1xf32>
    %113 = arith.divf %111, %112 : vector<16x1xf32>
    %114 = vector.broadcast %113 : vector<16x1xf32> to vector<16x32xf32>
    %115 = arith.subf %109, %114 : vector<16x32xf32>
    %116 = arith.mulf %115, %115 : vector<16x32xf32>
    %cst_34 = arith.constant dense<0.000000e+00> : vector<16xf32>
    %117 = vector.multi_reduction <add>, %116, %cst_34 [1] : vector<16x32xf32> to vector<16xf32>
    %118 = vector.shape_cast %117 : vector<16xf32> to vector<16x1xf32>
    %cst_35 = arith.constant 3.200000e+01 : f32
    %119 = vector.broadcast %cst_35 : f32 to vector<16x1xf32>
    %120 = arith.divf %118, %119 : vector<16x1xf32>
    %121 = vector.broadcast %113 : vector<16x1xf32> to vector<16x32xf32>
    %122 = arith.subf %109, %121 : vector<16x32xf32>
    %cst_36 = arith.constant 9.99999993E-9 : f32
    %123 = vector.broadcast %cst_36 : f32 to vector<16x1xf32>
    %124 = arith.addf %120, %123 : vector<16x1xf32>
    %125 = math.rsqrt %124 : vector<16x1xf32>
    %126 = vector.broadcast %125 : vector<16x1xf32> to vector<16x32xf32>
    %127 = arith.mulf %122, %126 : vector<16x32xf32>
    %128 = vector.broadcast %30 : vector<1x32xf32> to vector<16x32xf32>
    %129 = arith.mulf %127, %128 : vector<16x32xf32>
    %130 = vector.broadcast %31 : vector<1x32xf32> to vector<16x32xf32>
    %131 = arith.addf %129, %130 : vector<16x32xf32>
    %132 = arith.index_cast %c0_i32 : i32 to index
    %c0_37 = arith.constant 0 : index
    %c0_38 = arith.constant 0 : index
    %133 = vector.load %arg11[%132, %c0_37, %c0_38] : memref<2x32x32xbf16, #tpu.memory_space<vmem>>, vector<1x32x32xbf16>
    %134 = vector.shape_cast %133 : vector<1x32x32xbf16> to vector<32x32xbf16>
    %135 = arith.truncf %131 : vector<16x32xf32> to vector<16x32xbf16>
    %cst_39 = arith.constant dense<0.000000e+00> : vector<16x32xf32>
    %136 = tpu.matmul %135, %134, %cst_39 {dimension_numbers = #tpu.dot_dimension_numbers<[1], [0], [0], [1], [0, 0, 1, 1], [], []>} : vector<16x32xbf16>, vector<32x32xbf16>, vector<16x32xf32> -> vector<16x32xf32>
    %137 = vector.broadcast %32 : vector<1x32xf32> to vector<16x32xf32>
    %138 = arith.addf %136, %137 : vector<16x32xf32>
    %cst_40 = arith.constant 0.000000e+00 : f32
    %139 = vector.broadcast %cst_40 : f32 to vector<16x32xf32>
    %140 = arith.maximumf %138, %139 : vector<16x32xf32>
    %141 = arith.index_cast %c0_i32 : i32 to index
    %c0_41 = arith.constant 0 : index
    %c0_42 = arith.constant 0 : index
    %142 = vector.load %arg12[%141, %c0_41, %c0_42] : memref<2x32x32xbf16, #tpu.memory_space<vmem>>, vector<1x32x32xbf16>
    %143 = vector.shape_cast %142 : vector<1x32x32xbf16> to vector<32x32xbf16>
    %144 = arith.truncf %140 : vector<16x32xf32> to vector<16x32xbf16>
    %cst_43 = arith.constant dense<0.000000e+00> : vector<16x32xf32>
    %145 = tpu.matmul %144, %143, %cst_43 {dimension_numbers = #tpu.dot_dimension_numbers<[1], [0], [0], [1], [0, 0, 1, 1], [], []>} : vector<16x32xbf16>, vector<32x32xbf16>, vector<16x32xf32> -> vector<16x32xf32>
    %146 = vector.broadcast %33 : vector<1x32xf32> to vector<16x32xf32>
    %147 = arith.addf %145, %146 : vector<16x32xf32>
    %148 = arith.addf %131, %147 : vector<16x32xf32>
    %149 = arith.mulf %148, %16 : vector<16x32xf32>
    %c1_i32 = arith.constant 1 : i32
    %150 = arith.index_cast %c1_i32 : i32 to index
    %c0_44 = arith.constant 0 : index
    %c0_45 = arith.constant 0 : index
    %151 = vector.load %arg13[%150, %c0_44, %c0_45] : memref<2x16x32xf32, #tpu.memory_space<vmem>>, vector<1x16x32xf32>
    %152 = vector.shape_cast %151 : vector<1x16x32xf32> to vector<16x32xf32>
    %153 = vector.extract_strided_slice %152 {offsets = [0, 0], sizes = [1, 32], strides = [1, 1]} : vector<16x32xf32> to vector<1x32xf32>
    %154 = vector.extract_strided_slice %152 {offsets = [1, 0], sizes = [1, 32], strides = [1, 1]} : vector<16x32xf32> to vector<1x32xf32>
    %155 = vector.extract_strided_slice %152 {offsets = [2, 0], sizes = [1, 32], strides = [1, 1]} : vector<16x32xf32> to vector<1x32xf32>
    %156 = vector.extract_strided_slice %152 {offsets = [3, 0], sizes = [1, 32], strides = [1, 1]} : vector<16x32xf32> to vector<1x32xf32>
    %157 = vector.extract_strided_slice %152 {offsets = [4, 0], sizes = [1, 32], strides = [1, 1]} : vector<16x32xf32> to vector<1x32xf32>
    %158 = vector.extract_strided_slice %152 {offsets = [5, 0], sizes = [1, 32], strides = [1, 1]} : vector<16x32xf32> to vector<1x32xf32>
    %159 = vector.extract_strided_slice %152 {offsets = [6, 0], sizes = [1, 32], strides = [1, 1]} : vector<16x32xf32> to vector<1x32xf32>
    %160 = vector.extract_strided_slice %152 {offsets = [7, 0], sizes = [1, 32], strides = [1, 1]} : vector<16x32xf32> to vector<1x32xf32>
    %161 = vector.extract_strided_slice %152 {offsets = [8, 0], sizes = [1, 32], strides = [1, 1]} : vector<16x32xf32> to vector<1x32xf32>
    %162 = vector.extract_strided_slice %152 {offsets = [9, 0], sizes = [1, 32], strides = [1, 1]} : vector<16x32xf32> to vector<1x32xf32>
    %cst_46 = arith.constant dense<0.000000e+00> : vector<16xf32>
    %163 = vector.multi_reduction <add>, %149, %cst_46 [1] : vector<16x32xf32> to vector<16xf32>
    %164 = vector.shape_cast %163 : vector<16xf32> to vector<16x1xf32>
    %cst_47 = arith.constant 3.200000e+01 : f32
    %165 = vector.broadcast %cst_47 : f32 to vector<16x1xf32>
    %166 = arith.divf %164, %165 : vector<16x1xf32>
    %167 = vector.broadcast %166 : vector<16x1xf32> to vector<16x32xf32>
    %168 = arith.subf %149, %167 : vector<16x32xf32>
    %169 = arith.mulf %168, %168 : vector<16x32xf32>
    %cst_48 = arith.constant dense<0.000000e+00> : vector<16xf32>
    %170 = vector.multi_reduction <add>, %169, %cst_48 [1] : vector<16x32xf32> to vector<16xf32>
    %171 = vector.shape_cast %170 : vector<16xf32> to vector<16x1xf32>
    %cst_49 = arith.constant 3.200000e+01 : f32
    %172 = vector.broadcast %cst_49 : f32 to vector<16x1xf32>
    %173 = arith.divf %171, %172 : vector<16x1xf32>
    %174 = vector.broadcast %166 : vector<16x1xf32> to vector<16x32xf32>
    %175 = arith.subf %149, %174 : vector<16x32xf32>
    %cst_50 = arith.constant 9.99999993E-9 : f32
    %176 = vector.broadcast %cst_50 : f32 to vector<16x1xf32>
    %177 = arith.addf %173, %176 : vector<16x1xf32>
    %178 = math.rsqrt %177 : vector<16x1xf32>
    %179 = vector.broadcast %178 : vector<16x1xf32> to vector<16x32xf32>
    %180 = arith.mulf %175, %179 : vector<16x32xf32>
    %181 = vector.broadcast %153 : vector<1x32xf32> to vector<16x32xf32>
    %182 = arith.mulf %180, %181 : vector<16x32xf32>
    %183 = vector.broadcast %154 : vector<1x32xf32> to vector<16x32xf32>
    %184 = arith.addf %182, %183 : vector<16x32xf32>
    %185 = arith.index_cast %c1_i32 : i32 to index
    %c0_51 = arith.constant 0 : index
    %c0_52 = arith.constant 0 : index
    %186 = vector.load %arg7[%185, %c0_51, %c0_52] : memref<2x32x32xbf16, #tpu.memory_space<vmem>>, vector<1x32x32xbf16>
    %187 = vector.shape_cast %186 : vector<1x32x32xbf16> to vector<32x32xbf16>
    %188 = arith.truncf %184 : vector<16x32xf32> to vector<16x32xbf16>
    %cst_53 = arith.constant dense<0.000000e+00> : vector<16x32xf32>
    %189 = tpu.matmul %188, %187, %cst_53 {dimension_numbers = #tpu.dot_dimension_numbers<[1], [0], [0], [1], [0, 0, 1, 1], [], []>} : vector<16x32xbf16>, vector<32x32xbf16>, vector<16x32xf32> -> vector<16x32xf32>
    %190 = vector.broadcast %155 : vector<1x32xf32> to vector<16x32xf32>
    %191 = arith.addf %189, %190 : vector<16x32xf32>
    %192 = arith.index_cast %c1_i32 : i32 to index
    %c0_54 = arith.constant 0 : index
    %c0_55 = arith.constant 0 : index
    %193 = vector.load %arg8[%192, %c0_54, %c0_55] : memref<2x32x32xbf16, #tpu.memory_space<vmem>>, vector<1x32x32xbf16>
    %194 = vector.shape_cast %193 : vector<1x32x32xbf16> to vector<32x32xbf16>
    %195 = arith.truncf %149 : vector<16x32xf32> to vector<16x32xbf16>
    %cst_56 = arith.constant dense<0.000000e+00> : vector<16x32xf32>
    %196 = tpu.matmul %195, %194, %cst_56 {dimension_numbers = #tpu.dot_dimension_numbers<[1], [0], [0], [1], [0, 0, 1, 1], [], []>} : vector<16x32xbf16>, vector<32x32xbf16>, vector<16x32xf32> -> vector<16x32xf32>
    %197 = vector.broadcast %156 : vector<1x32xf32> to vector<16x32xf32>
    %198 = arith.addf %196, %197 : vector<16x32xf32>
    %199 = arith.index_cast %c1_i32 : i32 to index
    %c0_57 = arith.constant 0 : index
    %c0_58 = arith.constant 0 : index
    %200 = vector.load %arg9[%199, %c0_57, %c0_58] : memref<2x32x32xbf16, #tpu.memory_space<vmem>>, vector<1x32x32xbf16>
    %201 = vector.shape_cast %200 : vector<1x32x32xbf16> to vector<32x32xbf16>
    %202 = arith.truncf %149 : vector<16x32xf32> to vector<16x32xbf16>
    %cst_59 = arith.constant dense<0.000000e+00> : vector<16x32xf32>
    %203 = tpu.matmul %202, %201, %cst_59 {dimension_numbers = #tpu.dot_dimension_numbers<[1], [0], [0], [1], [0, 0, 1, 1], [], []>} : vector<16x32xbf16>, vector<32x32xbf16>, vector<16x32xf32> -> vector<16x32xf32>
    %204 = vector.broadcast %157 : vector<1x32xf32> to vector<16x32xf32>
    %205 = arith.addf %203, %204 : vector<16x32xf32>
    %206 = vector.shape_cast %191 : vector<16x32xf32> to vector<2x8x32xf32>
    %207 = vector.shape_cast %198 : vector<16x32xf32> to vector<2x8x32xf32>
    %208 = vector.shape_cast %205 : vector<16x32xf32> to vector<2x8x32xf32>
    %209 = arith.truncf %206 : vector<2x8x32xf32> to vector<2x8x32xbf16>
    %210 = arith.truncf %207 : vector<2x8x32xf32> to vector<2x8x32xbf16>
    "tpu.trace_start"() <{level = 10 : i32, message = "bqh,bkh->bqk"}> : () -> ()
    %cst_60 = arith.constant dense<0.000000e+00> : vector<2x8x8xf32>
    %211 = tpu.matmul %209, %210, %cst_60 {dimension_numbers = #tpu.dot_dimension_numbers<[2], [2], [1], [1], [0, 0, 0, 1, 1, 1], [0], [0]>} : vector<2x8x32xbf16>, vector<2x8x32xbf16>, vector<2x8x8xf32> -> vector<2x8x8xf32>
    "tpu.trace_stop"() : () -> ()
    %cst_61 = arith.constant 0.176776692 : f32
    %212 = vector.broadcast %cst_61 : f32 to vector<2x8x8xf32>
    %213 = arith.mulf %211, %212 : vector<2x8x8xf32>
    %cst_62 = arith.constant -1.000000e+30 : f32
    %214 = vector.shape_cast %20 : vector<1x8x8xi1> to vector<1x8x8xi1>
    %215 = vector.broadcast %214 : vector<1x8x8xi1> to vector<2x8x8xi1>
    %216 = vector.broadcast %cst_62 : f32 to vector<2x8x8xf32>
    %217 = arith.select %215, %213, %216 : vector<2x8x8xi1>, vector<2x8x8xf32>
    %cst_63 = arith.constant dense<0xFF800000> : vector<2x8xf32>
    %218 = vector.multi_reduction <maximumf>, %217, %cst_63 [2] : vector<2x8x8xf32> to vector<2x8xf32>
    %219 = vector.shape_cast %218 : vector<2x8xf32> to vector<2x8x1xf32>
    %220 = vector.broadcast %219 : vector<2x8x1xf32> to vector<2x8x8xf32>
    %221 = arith.subf %217, %220 : vector<2x8x8xf32>
    %222 = math.exp %221 : vector<2x8x8xf32>
    %cst_64 = arith.constant dense<0.000000e+00> : vector<2x8xf32>
    %223 = vector.multi_reduction <add>, %222, %cst_64 [2] : vector<2x8x8xf32> to vector<2x8xf32>
    %224 = vector.shape_cast %223 : vector<2x8xf32> to vector<2x8x1xf32>
    %225 = vector.broadcast %224 : vector<2x8x1xf32> to vector<2x8x8xf32>
    %226 = arith.divf %222, %225 : vector<2x8x8xf32>
    %227 = arith.truncf %226 : vector<2x8x8xf32> to vector<2x8x8xbf16>
    %228 = arith.truncf %208 : vector<2x8x32xf32> to vector<2x8x32xbf16>
    "tpu.trace_start"() <{level = 10 : i32, message = "bqk,bkh->bqh"}> : () -> ()
    %cst_65 = arith.constant dense<0.000000e+00> : vector<2x8x32xf32>
    %229 = tpu.matmul %227, %228, %cst_65 {dimension_numbers = #tpu.dot_dimension_numbers<[2], [1], [1], [2], [0, 0, 0, 1, 1, 2], [0], [0]>} : vector<2x8x8xbf16>, vector<2x8x32xbf16>, vector<2x8x32xf32> -> vector<2x8x32xf32>
    "tpu.trace_stop"() : () -> ()
    %230 = vector.shape_cast %229 : vector<2x8x32xf32> to vector<16x32xf32>
    %231 = arith.index_cast %c1_i32 : i32 to index
    %c0_66 = arith.constant 0 : index
    %c0_67 = arith.constant 0 : index
    %232 = vector.load %arg10[%231, %c0_66, %c0_67] : memref<2x32x32xbf16, #tpu.memory_space<vmem>>, vector<1x32x32xbf16>
    %233 = vector.shape_cast %232 : vector<1x32x32xbf16> to vector<32x32xbf16>
    %234 = arith.truncf %230 : vector<16x32xf32> to vector<16x32xbf16>
    %cst_68 = arith.constant dense<0.000000e+00> : vector<16x32xf32>
    %235 = tpu.matmul %234, %233, %cst_68 {dimension_numbers = #tpu.dot_dimension_numbers<[1], [0], [0], [1], [0, 0, 1, 1], [], []>} : vector<16x32xbf16>, vector<32x32xbf16>, vector<16x32xf32> -> vector<16x32xf32>
    %236 = vector.broadcast %158 : vector<1x32xf32> to vector<16x32xf32>
    %237 = arith.addf %235, %236 : vector<16x32xf32>
    %238 = arith.addf %184, %237 : vector<16x32xf32>
    %cst_69 = arith.constant dense<0.000000e+00> : vector<16xf32>
    %239 = vector.multi_reduction <add>, %238, %cst_69 [1] : vector<16x32xf32> to vector<16xf32>
    %240 = vector.shape_cast %239 : vector<16xf32> to vector<16x1xf32>
    %cst_70 = arith.constant 3.200000e+01 : f32
    %241 = vector.broadcast %cst_70 : f32 to vector<16x1xf32>
    %242 = arith.divf %240, %241 : vector<16x1xf32>
    %243 = vector.broadcast %242 : vector<16x1xf32> to vector<16x32xf32>
    %244 = arith.subf %238, %243 : vector<16x32xf32>
    %245 = arith.mulf %244, %244 : vector<16x32xf32>
    %cst_71 = arith.constant dense<0.000000e+00> : vector<16xf32>
    %246 = vector.multi_reduction <add>, %245, %cst_71 [1] : vector<16x32xf32> to vector<16xf32>
    %247 = vector.shape_cast %246 : vector<16xf32> to vector<16x1xf32>
    %cst_72 = arith.constant 3.200000e+01 : f32
    %248 = vector.broadcast %cst_72 : f32 to vector<16x1xf32>
    %249 = arith.divf %247, %248 : vector<16x1xf32>
    %250 = vector.broadcast %242 : vector<16x1xf32> to vector<16x32xf32>
    %251 = arith.subf %238, %250 : vector<16x32xf32>
    %cst_73 = arith.constant 9.99999993E-9 : f32
    %252 = vector.broadcast %cst_73 : f32 to vector<16x1xf32>
    %253 = arith.addf %249, %252 : vector<16x1xf32>
    %254 = math.rsqrt %253 : vector<16x1xf32>
    %255 = vector.broadcast %254 : vector<16x1xf32> to vector<16x32xf32>
    %256 = arith.mulf %251, %255 : vector<16x32xf32>
    %257 = vector.broadcast %159 : vector<1x32xf32> to vector<16x32xf32>
    %258 = arith.mulf %256, %257 : vector<16x32xf32>
    %259 = vector.broadcast %160 : vector<1x32xf32> to vector<16x32xf32>
    %260 = arith.addf %258, %259 : vector<16x32xf32>
    %261 = arith.index_cast %c1_i32 : i32 to index
    %c0_74 = arith.constant 0 : index
    %c0_75 = arith.constant 0 : index
    %262 = vector.load %arg11[%261, %c0_74, %c0_75] : memref<2x32x32xbf16, #tpu.memory_space<vmem>>, vector<1x32x32xbf16>
    %263 = vector.shape_cast %262 : vector<1x32x32xbf16> to vector<32x32xbf16>
    %264 = arith.truncf %260 : vector<16x32xf32> to vector<16x32xbf16>
    %cst_76 = arith.constant dense<0.000000e+00> : vector<16x32xf32>
    %265 = tpu.matmul %264, %263, %cst_76 {dimension_numbers = #tpu.dot_dimension_numbers<[1], [0], [0], [1], [0, 0, 1, 1], [], []>} : vector<16x32xbf16>, vector<32x32xbf16>, vector<16x32xf32> -> vector<16x32xf32>
    %266 = vector.broadcast %161 : vector<1x32xf32> to vector<16x32xf32>
    %267 = arith.addf %265, %266 : vector<16x32xf32>
    %cst_77 = arith.constant 0.000000e+00 : f32
    %268 = vector.broadcast %cst_77 : f32 to vector<16x32xf32>
    %269 = arith.maximumf %267, %268 : vector<16x32xf32>
    %270 = arith.index_cast %c1_i32 : i32 to index
    %c0_78 = arith.constant 0 : index
    %c0_79 = arith.constant 0 : index
    %271 = vector.load %arg12[%270, %c0_78, %c0_79] : memref<2x32x32xbf16, #tpu.memory_space<vmem>>, vector<1x32x32xbf16>
    %272 = vector.shape_cast %271 : vector<1x32x32xbf16> to vector<32x32xbf16>
    %273 = arith.truncf %269 : vector<16x32xf32> to vector<16x32xbf16>
    %cst_80 = arith.constant dense<0.000000e+00> : vector<16x32xf32>
    %274 = tpu.matmul %273, %272, %cst_80 {dimension_numbers = #tpu.dot_dimension_numbers<[1], [0], [0], [1], [0, 0, 1, 1], [], []>} : vector<16x32xbf16>, vector<32x32xbf16>, vector<16x32xf32> -> vector<16x32xf32>
    %275 = vector.broadcast %162 : vector<1x32xf32> to vector<16x32xf32>
    %276 = arith.addf %274, %275 : vector<16x32xf32>
    %277 = arith.addf %260, %276 : vector<16x32xf32>
    %278 = arith.mulf %277, %16 : vector<16x32xf32>
    %c2_i32 = arith.constant 2 : i32
    %279 = vector.shape_cast %278 : vector<16x32xf32> to vector<2x8x32xf32>
    %280 = vector.extract_strided_slice %279 {offsets = [0, 7, 0], sizes = [2, 1, 32], strides = [1, 1, 1]} : vector<2x8x32xf32> to vector<2x1x32xf32>
    %281 = vector.shape_cast %280 : vector<2x1x32xf32> to vector<2x32xf32>
    %c0_81 = arith.constant 0 : index
    %c0_82 = arith.constant 0 : index
    %282 = vector.load %arg14[%c0_81, %c0_82] : memref<2x32xf32, #tpu.memory_space<vmem>>, vector<2x32xf32>
    %283 = vector.extract_strided_slice %282 {offsets = [0, 0], sizes = [1, 32], strides = [1, 1]} : vector<2x32xf32> to vector<1x32xf32>
    %284 = vector.extract_strided_slice %282 {offsets = [1, 0], sizes = [1, 32], strides = [1, 1]} : vector<2x32xf32> to vector<1x32xf32>
    %cst_83 = arith.constant dense<0.000000e+00> : vector<2xf32>
    %285 = vector.multi_reduction <add>, %281, %cst_83 [1] : vector<2x32xf32> to vector<2xf32>
    %286 = vector.shape_cast %285 : vector<2xf32> to vector<2x1xf32>
    %cst_84 = arith.constant 3.200000e+01 : f32
    %287 = vector.broadcast %cst_84 : f32 to vector<2x1xf32>
    %288 = arith.divf %286, %287 : vector<2x1xf32>
    %289 = vector.broadcast %288 : vector<2x1xf32> to vector<2x32xf32>
    %290 = arith.subf %281, %289 : vector<2x32xf32>
    %291 = arith.mulf %290, %290 : vector<2x32xf32>
    %cst_85 = arith.constant dense<0.000000e+00> : vector<2xf32>
    %292 = vector.multi_reduction <add>, %291, %cst_85 [1] : vector<2x32xf32> to vector<2xf32>
    %293 = vector.shape_cast %292 : vector<2xf32> to vector<2x1xf32>
    %cst_86 = arith.constant 3.200000e+01 : f32
    %294 = vector.broadcast %cst_86 : f32 to vector<2x1xf32>
    %295 = arith.divf %293, %294 : vector<2x1xf32>
    %296 = vector.broadcast %288 : vector<2x1xf32> to vector<2x32xf32>
    %297 = arith.subf %281, %296 : vector<2x32xf32>
    %cst_87 = arith.constant 9.99999993E-9 : f32
    %298 = vector.broadcast %cst_87 : f32 to vector<2x1xf32>
    %299 = arith.addf %295, %298 : vector<2x1xf32>
    %300 = math.rsqrt %299 : vector<2x1xf32>
    %301 = vector.broadcast %300 : vector<2x1xf32> to vector<2x32xf32>
    %302 = arith.mulf %297, %301 : vector<2x32xf32>
    %303 = vector.broadcast %283 : vector<1x32xf32> to vector<2x32xf32>
    %304 = arith.mulf %302, %303 : vector<2x32xf32>
    %305 = vector.broadcast %284 : vector<1x32xf32> to vector<2x32xf32>
    %306 = arith.addf %304, %305 : vector<2x32xf32>
    %c0_88 = arith.constant 0 : index
    %c0_89 = arith.constant 0 : index
    %307 = vector.load %arg4[%c0_88, %c0_89] : memref<32x128xbf16, #tpu.memory_space<vmem>>, vector<32x128xbf16>
    %308 = arith.truncf %306 : vector<2x32xf32> to vector<2x32xbf16>
    %cst_90 = arith.constant dense<0.000000e+00> : vector<2x128xf32>
    %309 = tpu.matmul %308, %307, %cst_90 {dimension_numbers = #tpu.dot_dimension_numbers<[1], [0], [0], [1], [0, 0, 1, 1], [], []>} : vector<2x32xbf16>, vector<32x128xbf16>, vector<2x128xf32> -> vector<2x128xf32>
    %c0_91 = arith.constant 0 : index
    %c0_92 = arith.constant 0 : index
    %310 = vector.load %arg5[%c0_91, %c0_92] : memref<1x128xf32, #tpu.memory_space<vmem>>, vector<1x128xf32>
    %311 = vector.broadcast %310 : vector<1x128xf32> to vector<2x128xf32>
    %312 = arith.addf %309, %311 : vector<2x128xf32>
    %c0_93 = arith.constant 0 : index
    %c0_94 = arith.constant 0 : index
    %313 = vector.load %arg15[%c0_93, %c0_94] : memref<2x128xf32, #tpu.memory_space<vmem>>, vector<2x128xf32>
    tpu.vector_store %arg15[%c0_93, %c0_94], %312 {strides = array<i32>} : memref<2x128xf32, #tpu.memory_space<vmem>>, vector<2x128xf32>,
    %c0_95 = arith.constant 0 : index
    %c0_96 = arith.constant 0 : index
    %314 = vector.load %arg2[%c0_95, %c0_96] : memref<2x1xi32, #tpu.memory_space<vmem>>, vector<2x1xi32>
    %315 = tpu.iota {dimensions = array<i32: 1>} : vector<2x128xi32>
    %316 = vector.broadcast %314 : vector<2x1xi32> to vector<2x128xi32>
    %317 = arith.cmpi eq, %315, %316 : vector<2x128xi32>
    %318 = arith.extui %317 : vector<2x128xi1> to vector<2x128xi32>
    %319 = arith.sitofp %318 : vector<2x128xi32> to vector<2x128xf32>
    %cst_97 = arith.constant dense<0xFF800000> : vector<2xf32>
    %320 = vector.multi_reduction <maximumf>, %312, %cst_97 [1] : vector<2x128xf32> to vector<2xf32>
    %321 = vector.shape_cast %320 : vector<2xf32> to vector<2x1xf32>
    %322 = vector.broadcast %321 : vector<2x1xf32> to vector<2x128xf32>
    %323 = arith.subf %312, %322 : vector<2x128xf32>
    %324 = math.exp %323 : vector<2x128xf32>
    %cst_98 = arith.constant dense<0.000000e+00> : vector<2xf32>
    %325 = vector.multi_reduction <add>, %324, %cst_98 [1] : vector<2x128xf32> to vector<2xf32>
    %326 = vector.shape_cast %325 : vector<2xf32> to vector<2x1xf32>
    %327 = math.log %326 : vector<2x1xf32>
    %328 = arith.addf %321, %327 : vector<2x1xf32>
    %329 = arith.mulf %312, %319 : vector<2x128xf32>
    %cst_99 = arith.constant dense<0.000000e+00> : vector<2xf32>
    %330 = vector.multi_reduction <add>, %329, %cst_99 [1] : vector<2x128xf32> to vector<2xf32>
    %331 = vector.shape_cast %330 : vector<2xf32> to vector<2x1xf32>
    %332 = arith.subf %328, %331 : vector<2x1xf32>
    %c0_100 = arith.constant 0 : index
    %c0_101 = arith.constant 0 : index
    %333 = vector.load %arg16[%c0_100, %c0_101] : memref<2x1xf32, #tpu.memory_space<vmem>>, vector<2x1xf32>
    tpu.vector_store %arg16[%c0_100, %c0_101], %332 {strides = array<i32>} : memref<2x1xf32, #tpu.memory_space<vmem>>, vector<2x1xf32>,
    return
  }
  func.func @transform_0(%arg0: i32) -> (i32, i32) {
    %c0_i32 = arith.constant 0 : i32
    %c0_i32_0 = arith.constant 0 : i32
    return %arg0, %c0_i32 : i32, i32
  }
  func.func @transform_1(%arg0: i32) -> (i32, i32) {
    %c0_i32 = arith.constant 0 : i32
    %c0_i32_0 = arith.constant 0 : i32
    return %arg0, %c0_i32 : i32, i32
  }
  func.func @transform_2(%arg0: i32) -> (i32, i32) {
    %c0_i32 = arith.constant 0 : i32
    %c0_i32_0 = arith.constant 0 : i32
    %c0_i32_1 = arith.constant 0 : i32
    return %c0_i32, %c0_i32_0 : i32, i32
  }
  func.func @transform_3(%arg0: i32) -> (i32, i32) {
    %c0_i32 = arith.constant 0 : i32
    %c0_i32_0 = arith.constant 0 : i32
    %c0_i32_1 = arith.constant 0 : i32
    return %c0_i32, %c0_i32_0 : i32, i32
  }
  func.func @transform_4(%arg0: i32) -> (i32, i32) {
    %c0_i32 = arith.constant 0 : i32
    %c0_i32_0 = arith.constant 0 : i32
    %c0_i32_1 = arith.constant 0 : i32
    return %c0_i32, %c0_i32_0 : i32, i32
  }
  func.func @transform_5(%arg0: i32) -> (i32, i32) {
    %c0_i32 = arith.constant 0 : i32
    %c0_i32_0 = arith.constant 0 : i32
    %c0_i32_1 = arith.constant 0 : i32
    return %c0_i32, %c0_i32_0 : i32, i32
  }
  func.func @transform_6(%arg0: i32) -> (i32, i32, i32) {
    %c0_i32 = arith.constant 0 : i32
    %c0_i32_0 = arith.constant 0 : i32
    %c0_i32_1 = arith.constant 0 : i32
    %c0_i32_2 = arith.constant 0 : i32
    return %c0_i32, %c0_i32_0, %c0_i32_1 : i32, i32, i32
  }
  func.func @transform_7(%arg0: i32) -> (i32, i32, i32) {
    %c0_i32 = arith.constant 0 : i32
    %c0_i32_0 = arith.constant 0 : i32
    %c0_i32_1 = arith.constant 0 : i32
    %c0_i32_2 = arith.constant 0 : i32
    return %c0_i32, %c0_i32_0, %c0_i32_1 : i32, i32, i32
  }
  func.func @transform_8(%arg0: i32) -> (i32, i32, i32) {
    %c0_i32 = arith.constant 0 : i32
    %c0_i32_0 = arith.constant 0 : i32
    %c0_i32_1 = arith.constant 0 : i32
    %c0_i32_2 = arith.constant 0 : i32
    return %c0_i32, %c0_i32_0, %c0_i32_1 : i32, i32, i32
  }
  func.func @transform_9(%arg0: i32) -> (i32, i32, i32) {
    %c0_i32 = arith.constant 0 : i32
    %c0_i32_0 = arith.constant 0 : i32
    %c0_i32_1 = arith.constant 0 : i32
    %c0_i32_2 = arith.constant 0 : i32
    return %c0_i32, %c0_i32_0, %c0_i32_1 : i32, i32, i32
  }
  func.func @transform_10(%arg0: i32) -> (i32, i32, i32) {
    %c0_i32 = arith.constant 0 : i32
    %c0_i32_0 = arith.constant 0 : i32
    %c0_i32_1 = arith.constant 0 : i32
    %c0_i32_2 = arith.constant 0 : i32
    return %c0_i32, %c0_i32_0, %c0_i32_1 : i32, i32, i32
  }
  func.func @transform_11(%arg0: i32) -> (i32, i32, i32) {
    %c0_i32 = arith.constant 0 : i32
    %c0_i32_0 = arith.constant 0 : i32
    %c0_i32_1 = arith.constant 0 : i32
    %c0_i32_2 = arith.constant 0 : i32
    return %c0_i32, %c0_i32_0, %c0_i32_1 : i32, i32, i32
  }
  func.func @transform_12(%arg0: i32) -> (i32, i32, i32) {
    %c0_i32 = arith.constant 0 : i32
    %c0_i32_0 = arith.constant 0 : i32
    %c0_i32_1 = arith.constant 0 : i32
    %c0_i32_2 = arith.constant 0 : i32
    return %c0_i32, %c0_i32_0, %c0_i32_1 : i32, i32, i32
  }
  func.func @transform_13(%arg0: i32) -> (i32, i32) {
    %c0_i32 = arith.constant 0 : i32
    %c0_i32_0 = arith.constant 0 : i32
    %c0_i32_1 = arith.constant 0 : i32
    return %c0_i32, %c0_i32_0 : i32, i32
  }
  func.func @transform_14(%arg0: i32) -> (i32, i32) {
    %c0_i32 = arith.constant 0 : i32
    %c0_i32_0 = arith.constant 0 : i32
    return %arg0, %c0_i32 : i32, i32
  }
  func.func @transform_15(%arg0: i32) -> (i32, i32) {
    %c0_i32 = arith.constant 0 : i32
    %c0_i32_0 = arith.constant 0 : i32
    return %arg0, %c0_i32 : i32, i32
  }
}

</mosaic_0001>

<llo_original>
// kernel: sasrec_forward.1
$region0: #{sasrec_forward.1}
  #allocation0 [shape = 'u32[]', space=smem, size = 0x4, offset = 0x4, fixed_abs, tag = 'smem constant byte address 0x4 - core index']
  #allocation1 [shape = 'u32[144,128]{1,0:T(1,128)}', space=vmem, size = 0x12000, scoped, tag = 'internal scratch']
  %s0 = inlined_call_operand.vmem [shape: s32[16,1], index: 0, kind: input, shape index: {}]
  %s1 = inlined_call_operand.vmem [shape: s32[2,1], index: 1, kind: input, shape index: {}]
  %s2 = inlined_call_operand.vmem [shape: bf16[128,32], index: 2, kind: input, shape index: {}]
  %s3 = inlined_call_operand.hbm [shape: bf16[32,128], index: 3, kind: input, shape index: {}]
  %s4 = inlined_call_operand.hbm [shape: f32[1,128], index: 4, kind: input, shape index: {}]
  %s5 = inlined_call_operand.vmem [shape: f32[16,32], index: 5, kind: input, shape index: {}]
  %s6 = inlined_call_operand.vmem [shape: bf16[2,32,32], index: 6, kind: input, shape index: {}]
  %s7 = inlined_call_operand.vmem [shape: bf16[2,32,32], index: 7, kind: input, shape index: {}]
  %s8 = inlined_call_operand.vmem [shape: bf16[2,32,32], index: 8, kind: input, shape index: {}]
  %s9 = inlined_call_operand.vmem [shape: bf16[2,32,32], index: 9, kind: input, shape index: {}]
  %s10 = inlined_call_operand.hbm [shape: bf16[2,32,32], index: 10, kind: input, shape index: {}]
  %s11 = inlined_call_operand.hbm [shape: bf16[2,32,32], index: 11, kind: input, shape index: {}]
  %s12 = inlined_call_operand.hbm [shape: f32[2,16,32], index: 12, kind: input, shape index: {}]
  %s13 = inlined_call_operand.vmem [shape: f32[2,32], index: 13, kind: input, shape index: {}]
  %s14 = inlined_call_operand.hbm [shape: f32[2,128], index: 14, kind: output, shape index: {0}]
  %s15 = inlined_call_operand.vmem [shape: f32[2,1], index: 15, kind: output, shape index: {1}]
  %16 = xla_tuple %s14, %s15
  %s17 = sld [smem:[#allocation0]]
  $region94: #{sasrec_forward.1} parent=0
    _
  %s19 = ssub.s32 1, %s17
  %s20 = scalar_select 0, %s19, %s17
  $region1: #{sasrec_forward.1} parent=0
    #allocation2 [shape = 'u8[8192]{0}', space=vmem, size = 0x2000, scoped, tag = 'input window, operand 3, single buffered']
    #allocation3 [shape = 's32[1]{0}', space=sflag, size = 0x4, scoped, tag = 'scoped memory for sasrec_forward.1']
    #allocation4 [shape = 's32[1]{0}', space=sflag, size = 0x4, scoped, tag = 'scoped memory for sasrec_forward.1']
    #allocation5 [shape = 'u8[512]{0}', space=vmem, size = 0x400, scoped, tag = 'input window, operand 4, single buffered']
    #allocation6 [shape = 's32[1]{0}', space=sflag, size = 0x4, scoped, tag = 'scoped memory for sasrec_forward.1']
    #allocation7 [shape = 'u8[16384]{0}', space=vmem, size = 0x4000, scoped, tag = 'input window, operand 10, single buffered']
    #allocation8 [shape = 'u8[16384]{0}', space=vmem, size = 0x4000, scoped, tag = 'input window, operand 11, single buffered']
    #allocation9 [shape = 's32[1]{0}', space=sflag, size = 0x4, scoped, tag = 'scoped memory for sasrec_forward.1']
    #allocation10 [shape = 'u8[16384]{0}', space=vmem, size = 0x4000, scoped, tag = 'input window, operand 12, single buffered']
    #allocation11 [shape = 'u8[1024]{0}', space=vmem, size = 0x400, scoped, tag = 'output window, operand 0, single buffered']
    %21 = vsyncpa [#allocation3], 0
    %22 = vsyncpa [#allocation6], 0
    %23 = vsyncpa [#allocation9], 0
    %24 = vsyncpa [#allocation4], 0
    // Predicated region
    $region2: #{sasrec_forward.1} parent=1 // pred_check
      _
    $region3: #{sasrec_forward.1} parent=1 // pred_check_branch
      %26 = sbr.rel (0) target = $region5
    $region4: #{sasrec_forward.1} parent=1 // pred_region
      _
    $region5: #{sasrec_forward.1} parent=1 // pred_fallthru
      _
    // Predicated region
    $region6: #{sasrec_forward.1} parent=1 // pred_check
      _
    $region7: #{sasrec_forward.1} parent=1 // pred_check_branch
      %28 = sbr.rel (0) target = $region9
    $region8: #{sasrec_forward.1} parent=1 // pred_region
      _
    $region9: #{sasrec_forward.1} parent=1 // pred_fallthru
      _
    // Predicated region
    $region10: #{sasrec_forward.1} parent=1 // pred_check
      _
    $region11: #{sasrec_forward.1} parent=1 // pred_check_branch
      %30 = sbr.rel (0) target = $region13
    $region12: #{sasrec_forward.1} parent=1 // pred_region
      _
    $region13: #{sasrec_forward.1} parent=1 // pred_fallthru
      _
    // Predicated region
    $region14: #{sasrec_forward.1} parent=1 // pred_check
      _
    $region15: #{sasrec_forward.1} parent=1 // pred_check_branch
      %32 = sbr.rel (0) target = $region17
    $region16: #{sasrec_forward.1} parent=1 // pred_region
      %s34 = ssub.s32 256, 256
      %35 = vsyncadd [#allocation3], %s34
      %s36 = sshll.u32 [#allocation2], 4
      %s37 = int_to_ptr.vmem [resolvable:$true] %s36
      %42 = dma.hbm_to_vmem [thread:$0]  %s3, 256, %s37, [#allocation3], 64, 64, 4
    $region17: #{sasrec_forward.1} parent=1 // pred_fallthru
      _
    // Predicated region
    $region18: #{sasrec_forward.1} parent=1 // pred_check
      _
    $region19: #{sasrec_forward.1} parent=1 // pred_check_branch
      %44 = sbr.rel (0) target = $region21
    $region20: #{sasrec_forward.1} parent=1 // pred_region
      %s46 = ssub.s32 16, 16
      %47 = vsyncadd [#allocation6], %s46
      %s49 = sshll.u32 [#allocation5], 4
      %s50 = int_to_ptr.vmem [resolvable:$true] %s49
      %52 = dma.hbm_to_vmem [thread:$0]  %s4, 16, %s50, [#allocation6]
    $region21: #{sasrec_forward.1} parent=1 // pred_fallthru
      _
    // Predicated region
    $region22: #{sasrec_forward.1} parent=1 // pred_check
      _
    $region23: #{sasrec_forward.1} parent=1 // pred_check_branch
      %54 = sbr.rel (0) target = $region25
    $region24: #{sasrec_forward.1} parent=1 // pred_region
      _
    $region25: #{sasrec_forward.1} parent=1 // pred_fallthru
      _
    // Predicated region
    $region26: #{sasrec_forward.1} parent=1 // pred_check
      _
    $region27: #{sasrec_forward.1} parent=1 // pred_check_branch
      %56 = sbr.rel (0) target = $region29
    $region28: #{sasrec_forward.1} parent=1 // pred_region
      _
    $region29: #{sasrec_forward.1} parent=1 // pred_fallthru
      _
    // Predicated region
    $region30: #{sasrec_forward.1} parent=1 // pred_check
      _
    $region31: #{sasrec_forward.1} parent=1 // pred_check_branch
      %58 = sbr.rel (0) target = $region33
    $region32: #{sasrec_forward.1} parent=1 // pred_region
      _
    $region33: #{sasrec_forward.1} parent=1 // pred_fallthru
      _
    // Predicated region
    $region34: #{sasrec_forward.1} parent=1 // pred_check
      _
    $region35: #{sasrec_forward.1} parent=1 // pred_check_branch
      %60 = sbr.rel (0) target = $region37
    $region36: #{sasrec_forward.1} parent=1 // pred_region
      _
    $region37: #{sasrec_forward.1} parent=1 // pred_fallthru
      _
    // Predicated region
    $region38: #{sasrec_forward.1} parent=1 // pred_check
      _
    $region39: #{sasrec_forward.1} parent=1 // pred_check_branch
      %62 = sbr.rel (0) target = $region41
    $region40: #{sasrec_forward.1} parent=1 // pred_region
      _
    $region41: #{sasrec_forward.1} parent=1 // pred_fallthru
      _
    // Predicated region
    $region42: #{sasrec_forward.1} parent=1 // pred_check
      _
    $region43: #{sasrec_forward.1} parent=1 // pred_check_branch
      %64 = sbr.rel (0) target = $region45
    $region44: #{sasrec_forward.1} parent=1 // pred_region
      %s66 = ssub.s32 512, 512
      %67 = vsyncadd [#allocation6], %s66
      %s68 = sshll.u32 [#allocation7], 4
      %s69 = int_to_ptr.vmem [resolvable:$true] %s68
      %74 = dma.hbm_to_vmem [thread:$0]  %s10, 512, %s69, [#allocation6], 64, 64, 4
    $region45: #{sasrec_forward.1} parent=1 // pred_fallthru
      _
    // Predicated region
    $region46: #{sasrec_forward.1} parent=1 // pred_check
      _
    $region47: #{sasrec_forward.1} parent=1 // pred_check_branch
      %76 = sbr.rel (0) target = $region49
    $region48: #{sasrec_forward.1} parent=1 // pred_region
      %s78 = ssub.s32 512, 512
      %79 = vsyncadd [#allocation9], %s78
      %s80 = sshll.u32 [#allocation8], 4
      %s81 = int_to_ptr.vmem [resolvable:$true] %s80
      %86 = dma.hbm_to_vmem [thread:$0]  %s11, 512, %s81, [#allocation9], 64, 64, 4
    $region49: #{sasrec_forward.1} parent=1 // pred_fallthru
      _
    // Predicated region
    $region50: #{sasrec_forward.1} parent=1 // pred_check
      _
    $region51: #{sasrec_forward.1} parent=1 // pred_check_branch
      %88 = sbr.rel (0) target = $region53
    $region52: #{sasrec_forward.1} parent=1 // pred_region
      %s90 = ssub.s32 512, 512
      %91 = vsyncadd [#allocation9], %s90
      %s92 = sshll.u32 [#allocation10], 4
      %s93 = int_to_ptr.vmem [resolvable:$true] %s92
      %98 = dma.hbm_to_vmem [thread:$0]  %s12, 512, %s93, [#allocation9], 128, 128, 8
    $region53: #{sasrec_forward.1} parent=1 // pred_fallthru
      _
    // Predicated region
    $region54: #{sasrec_forward.1} parent=1 // pred_check
      _
    $region55: #{sasrec_forward.1} parent=1 // pred_check_branch
      %100 = sbr.rel (0) target = $region57
    $region56: #{sasrec_forward.1} parent=1 // pred_region
      _
    $region57: #{sasrec_forward.1} parent=1 // pred_fallthru
      _
    // Predicated region
    $region58: #{sasrec_forward.1} parent=1 // pred_check
      _
    $region59: #{sasrec_forward.1} parent=1 // pred_check_branch
      %102 = sbr.rel (0) target = $region61
    $region60: #{sasrec_forward.1} parent=1 // pred_region
      %103 = dma.done [#allocation3], 256
    $region61: #{sasrec_forward.1} parent=1 // pred_fallthru
      _
    // Predicated region
    $region62: #{sasrec_forward.1} parent=1 // pred_check
      _
    $region63: #{sasrec_forward.1} parent=1 // pred_check_branch
      %105 = sbr.rel (0) target = $region65
    $region64: #{sasrec_forward.1} parent=1 // pred_region
      %106 = dma.done [#allocation6], 16
    $region65: #{sasrec_forward.1} parent=1 // pred_fallthru
      _
    // Predicated region
    $region66: #{sasrec_forward.1} parent=1 // pred_check
      _
    $region67: #{sasrec_forward.1} parent=1 // pred_check_branch
      %108 = sbr.rel (0) target = $region69
    $region68: #{sasrec_forward.1} parent=1 // pred_region
      %109 = dma.done [#allocation6], 512
    $region69: #{sasrec_forward.1} parent=1 // pred_fallthru
      _
    // Predicated region
    $region70: #{sasrec_forward.1} parent=1 // pred_check
      _
    $region71: #{sasrec_forward.1} parent=1 // pred_check_branch
      %111 = sbr.rel (0) target = $region73
    $region72: #{sasrec_forward.1} parent=1 // pred_region
      %112 = dma.done [#allocation9], 512
    $region73: #{sasrec_forward.1} parent=1 // pred_fallthru
      _
    // Predicated region
    $region74: #{sasrec_forward.1} parent=1 // pred_check
      _
    $region75: #{sasrec_forward.1} parent=1 // pred_check_branch
      %114 = sbr.rel (0) target = $region77
    $region76: #{sasrec_forward.1} parent=1 // pred_region
      %115 = dma.done [#allocation9], 512
    $region77: #{sasrec_forward.1} parent=1 // pred_fallthru
      _
    %v117 = vld [vmem:[%s0] sm:$0xff]
    %v118 = vld [vmem:[%s0 + $0x8] sm:$0xff]
    %v119 = vlaneseq
    %v120 = vand.u32 %v119, 127
    %121 = vset.pattern.permute.xlu0 0
    %122 = vperm.xlu0 %121, %v117
    %v123 = vpop.permute.xlu0 %122
    %124 = vset.pattern.permute.xlu0 0
    %125 = vperm.xlu0 %124, %v118
    %v126 = vpop.permute.xlu0 %125
    %vm127 = vcmp.eq.s32.totalorder %v120, %v123
    %vm128 = vcmp.eq.s32.totalorder %v120, %v126
    %v129 = vsel %vm127, 1, 0
    %v130 = vsel %vm128, 1, 0
    %v131 = vcvt.s32.f32 %v129
    %v132 = vcvt.s32.f32 %v130
    %v133 = vpack.c.bf16 %v132, %v131
    %v134 = vld [vmem:[%s2] sm:$0xf]
    %v135 = vld [vmem:[%s2 + $0x4] sm:$0xf]
    %v136 = vld [vmem:[%s2 + $0x8] sm:$0xf]
    %v137 = vld [vmem:[%s2 + $0xc] sm:$0xf]
    %v138 = vld [vmem:[%s2 + $0x10] sm:$0xf]
    %v139 = vld [vmem:[%s2 + $0x14] sm:$0xf]
    %v140 = vld [vmem:[%s2 + $0x18] sm:$0xf]
    %v141 = vld [vmem:[%s2 + $0x1c] sm:$0xf]
    %v142 = vld [vmem:[%s2 + $0x20] sm:$0xf]
    %v143 = vld [vmem:[%s2 + $0x24] sm:$0xf]
    %v144 = vld [vmem:[%s2 + $0x28] sm:$0xf]
    %v145 = vld [vmem:[%s2 + $0x2c] sm:$0xf]
    %v146 = vld [vmem:[%s2 + $0x30] sm:$0xf]
    %v147 = vld [vmem:[%s2 + $0x34] sm:$0xf]
    %v148 = vld [vmem:[%s2 + $0x38] sm:$0xf]
    %v149 = vld [vmem:[%s2 + $0x3c] sm:$0xf]
    %v166 = vunpack.c.l.b16 %v134
    %v167 = vunpack.c.l.b16 %v135
    %v168 = vunpack.c.l.b16 %v136
    %v169 = vunpack.c.l.b16 %v137
    %v170 = vunpack.c.l.b16 %v138
    %v171 = vunpack.c.l.b16 %v139
    %v172 = vunpack.c.l.b16 %v140
    %v173 = vunpack.c.l.b16 %v141
    %v174 = vunpack.c.l.b16 %v142
    %v175 = vunpack.c.l.b16 %v143
    %v176 = vunpack.c.l.b16 %v144
    %v177 = vunpack.c.l.b16 %v145
    %v178 = vunpack.c.l.b16 %v146
    %v179 = vunpack.c.l.b16 %v147
    %v180 = vunpack.c.l.b16 %v148
    %v181 = vunpack.c.l.b16 %v149
    %v182 = vpack.c.b16 %v167, %v166
    %v183 = vpack.c.b16 %v169, %v168
    %v184 = vpack.c.b16 %v171, %v170
    %v185 = vpack.c.b16 %v173, %v172
    %v186 = vpack.c.b16 %v175, %v174
    %v187 = vpack.c.b16 %v177, %v176
    %v188 = vpack.c.b16 %v179, %v178
    %v189 = vpack.c.b16 %v181, %v180
    %198 = vmatprep.subr.bf16.mxu0 0
    %199 = vmatpush1.bf16.msra.mxu0 %v189
    %200 = vmatprep.subr.bf16.mxu0 0
    %201 = vmatpush1.bf16.msra.mxu0 %v188
    %202 = vmatprep.subr.bf16.mxu0 0
    %203 = vmatpush1.bf16.msra.mxu0 %v187
    %204 = vmatprep.subr.bf16.mxu0 0
    %205 = vmatpush1.bf16.msra.mxu0 %v186
    %206 = vmatprep.subr.bf16.mxu0 0
    %207 = vmatpush1.bf16.msra.mxu0 %v185
    %208 = vmatprep.subr.bf16.mxu0 0
    %209 = vmatpush1.bf16.msra.mxu0 %v184
    %210 = vmatprep.subr.bf16.mxu0 0
    %211 = vmatpush1.bf16.msra.mxu0 %v183
    %212 = vmatprep.subr.bf16.mxu0 0
    %213 = vmatpush1.bf16.msra.mxu0 %v182
    %214 = vmatprep.subr.bf16.mxu0 0
    %215 = vmatpush2.bf16.msra.mxu0 0
    %216 = vmatprep.subr.bf16.mxu0 0
    %217 = vmatpush2.bf16.msra.mxu0 0
    %218 = vmatprep.subr.bf16.mxu0 0
    %219 = vmatpush2.bf16.msra.mxu0 0
    %220 = vmatprep.subr.bf16.mxu0 0
    %221 = vmatpush2.bf16.msra.mxu0 0
    %222 = vmatprep.subr.bf16.mxu0 0
    %223 = vmatpush2.bf16.msra.mxu0 0
    %224 = vmatprep.subr.bf16.mxu0 0
    %225 = vmatpush2.bf16.msra.mxu0 0
    %226 = vmatprep.subr.bf16.mxu0 0
    %227 = vmatpush2.bf16.msra.mxu0 0
    %228 = vmatprep.subr.bf16.mxu0 0
    %229 = vmatpush2.bf16.msra.mxu0 0
    %230 = vmatprep.mubr.bf16.mxu0 0
    %231 = vmatmul.mubr.bf16.gmra.mxu0 %v133
    %v232 = vpop.f32.mrf.mxu0
    %v233 = vadd.f32 0.0, %v232
    %v234 = vpop.f32.mrf.mxu0
    %v235 = vpop.f32.mrf.mxu0
    %v236 = vadd.f32 0.0, %v235
    %v237 = vpop.f32.mrf.mxu0
    %238 = vdwg.mxu0
    %v239 = vmul.f32 %v233, 4.0
    %v240 = vmul.f32 %v236, 4.0
    %v241 = vld [vmem:[%s5] sm:$0xff]
    %v242 = vld [vmem:[%s5 + $0x8] sm:$0xff]
    %v243 = vadd.f32 %v239, %v241
    %v244 = vadd.f32 %v240, %v242
    %vm245 = vcmp.ne.f32.partialorder %v243, 0.0
    %vm246 = vcmp.ne.f32.partialorder %v244, 0.0
    %v247 = vsel %vm245, 1, 0
    %v248 = vsel %vm246, 1, 0
    %v249 = vcvt.s32.f32 %v247
    %v250 = vcvt.s32.f32 %v248
    %v251 = vmul.f32 %v243, %v249
    %v252 = vmul.f32 %v244, %v250
    %v253 = vlaneseq
    %v254 = vshrl.u32 %v253, 7
    %vm255 = vcmp.le.s32.totalorder %v120, %v254
    %v256 = vld [vmem:[#allocation10] sm:$0xff]
    %v257 = vld [vmem:[#allocation10 + $0x8] sm:$0xff]
    %vm258 = vcmask 261120
    %v259 = vsel %vm258, %v251, 0.0
    %260 = vadd.xlane.f32.xlu0 %v259
    %v261 = vpop.xlane.xlu0 %260
    %v262 = vsel %vm258, %v252, 0.0
    %263 = vadd.xlane.f32.xlu0 %v262
    %v264 = vpop.xlane.xlu0 %263
    %v265 = vrcp.pop 32.0
    %v266 = vmul.f32 %v261, %v265
    %v267 = vmul.f32 %v264, %v265
    %v268 = vsub.f32 %v251, %v266
    %v269 = vsub.f32 %v252, %v267
    %v270 = vmul.f32 %v268, %v268
    %v271 = vmul.f32 %v269, %v269
    %v272 = vsel %vm258, %v270, 0.0
    %273 = vadd.xlane.f32.xlu0 %v272
    %v274 = vpop.xlane.xlu0 %273
    %v275 = vsel %vm258, %v271, 0.0
    %276 = vadd.xlane.f32.xlu0 %v275
    %v277 = vpop.xlane.xlu0 %276
    %v278 = vmul.f32 %v274, %v265
    %v279 = vmul.f32 %v277, %v265
    %v280 = vadd.f32 %v278, 1e-08
    %v281 = vadd.f32 %v279, 1e-08
    %v282 = vrsqrt.pop %v280
    %v283 = vrsqrt.pop %v281
    %v284 = vmul.f32 %v268, %v282
    %v285 = vmul.f32 %v269, %v283
    %v286 = vlaneseq
    %v287 = vshrl.u32 %v286, 7
    %v288 = vsub.s32 0, %v287
    %v289 = vrot.slane %v256, %v288
    %v290 = vmul.f32 %v284, %v289
    %v291 = vmul.f32 %v285, %v289
    %v292 = vlaneseq
    %v293 = vshrl.u32 %v292, 7
    %v294 = vsub.s32 1, %v293
    %v295 = vrot.slane %v256, %v294
    %v296 = vadd.f32 %v290, %v295
    %v297 = vadd.f32 %v291, %v295
    %v298 = vld [vmem:[%s6] sm:$0xf]
    %v299 = vld [vmem:[%s6 + $0x4] sm:$0xf]
    %v300 = vld [vmem:[%s6 + $0x8] sm:$0xf]
    %v301 = vld [vmem:[%s6 + $0xc] sm:$0xf]
    %v302 = vpack.c.bf16 %v297, %v296
    %v303 = vlaneseq
    %v304 = vshrl.u32 %v303, 7
    %v305 = vsub.s32 2, %v304
    %v306 = vrot.slane %v256, %v305
    %v311 = vunpack.c.l.b16 %v298
    %v312 = vunpack.c.l.b16 %v299
    %v313 = vunpack.c.l.b16 %v300
    %v314 = vunpack.c.l.b16 %v301
    %v315 = vpack.c.b16 %v312, %v311
    %v316 = vpack.c.b16 %v314, %v313
    %v320 = vsel %vm258, %v302, 0
    %322 = vmatprep.subr.bf16.mxu0 0
    %323 = vmatpush1.bf16.msra.mxu0 0
    %324 = vmatprep.subr.bf16.mxu0 0
    %325 = vmatpush1.bf16.msra.mxu0 0
    %326 = vmatprep.subr.bf16.mxu0 0
    %327 = vmatpush1.bf16.msra.mxu0 0
    %328 = vmatprep.subr.bf16.mxu0 0
    %329 = vmatpush1.bf16.msra.mxu0 0
    %330 = vmatprep.subr.bf16.mxu0 0
    %331 = vmatpush1.bf16.msra.mxu0 0
    %332 = vmatprep.subr.bf16.mxu0 0
    %333 = vmatpush1.bf16.msra.mxu0 0
    %334 = vmatprep.subr.bf16.mxu0 0
    %335 = vmatpush1.bf16.msra.mxu0 %v316
    %336 = vmatprep.subr.bf16.mxu0 0
    %337 = vmatpush1.bf16.msra.mxu0 %v315
    %338 = vmatprep.subr.bf16.mxu0 0
    %339 = vmatpush2.bf16.msra.mxu0 0
    %340 = vmatprep.subr.bf16.mxu0 0
    %341 = vmatpush2.bf16.msra.mxu0 0
    %342 = vmatprep.subr.bf16.mxu0 0
    %343 = vmatpush2.bf16.msra.mxu0 0
    %344 = vmatprep.subr.bf16.mxu0 0
    %345 = vmatpush2.bf16.msra.mxu0 0
    %346 = vmatprep.subr.bf16.mxu0 0
    %347 = vmatpush2.bf16.msra.mxu0 0
    %348 = vmatprep.subr.bf16.mxu0 0
    %349 = vmatpush2.bf16.msra.mxu0 0
    %350 = vmatprep.subr.bf16.mxu0 0
    %351 = vmatpush2.bf16.msra.mxu0 0
    %352 = vmatprep.subr.bf16.mxu0 0
    %353 = vmatpush2.bf16.msra.mxu0 0
    %354 = vmatprep.mubr.bf16.mxu0 0
    %355 = vmatmul.mubr.bf16.gmra.mxu0 %v320
    %v356 = vpop.f32.mrf.mxu0
    %v357 = vadd.f32 %v306, %v356
    %v358 = vpop.f32.mrf.mxu0
    %v359 = vpop.f32.mrf.mxu0
    %v360 = vadd.f32 %v306, %v359
    %v361 = vpop.f32.mrf.mxu0
    %362 = vdwg.mxu0
    %v363 = vld [vmem:[%s7] sm:$0xf]
    %v364 = vld [vmem:[%s7 + $0x4] sm:$0xf]
    %v365 = vld [vmem:[%s7 + $0x8] sm:$0xf]
    %v366 = vld [vmem:[%s7 + $0xc] sm:$0xf]
    %v367 = vpack.c.bf16 %v252, %v251
    %v368 = vlaneseq
    %v369 = vshrl.u32 %v368, 7
    %v370 = vsub.s32 3, %v369
    %v371 = vrot.slane %v256, %v370
    %v376 = vunpack.c.l.b16 %v363
    %v377 = vunpack.c.l.b16 %v364
    %v378 = vunpack.c.l.b16 %v365
    %v379 = vunpack.c.l.b16 %v366
    %v380 = vpack.c.b16 %v377, %v376
    %v381 = vpack.c.b16 %v379, %v378
    %v385 = vsel %vm258, %v367, 0
    %387 = vmatprep.subr.bf16.mxu0 0
    %388 = vmatpush1.bf16.msra.mxu0 0
    %389 = vmatprep.subr.bf16.mxu0 0
    %390 = vmatpush1.bf16.msra.mxu0 0
    %391 = vmatprep.subr.bf16.mxu0 0
    %392 = vmatpush1.bf16.msra.mxu0 0
    %393 = vmatprep.subr.bf16.mxu0 0
    %394 = vmatpush1.bf16.msra.mxu0 0
    %395 = vmatprep.subr.bf16.mxu0 0
    %396 = vmatpush1.bf16.msra.mxu0 0
    %397 = vmatprep.subr.bf16.mxu0 0
    %398 = vmatpush1.bf16.msra.mxu0 0
    %399 = vmatprep.subr.bf16.mxu0 0
    %400 = vmatpush1.bf16.msra.mxu0 %v381
    %401 = vmatprep.subr.bf16.mxu0 0
    %402 = vmatpush1.bf16.msra.mxu0 %v380
    %403 = vmatprep.subr.bf16.mxu0 0
    %404 = vmatpush2.bf16.msra.mxu0 0
    %405 = vmatprep.subr.bf16.mxu0 0
    %406 = vmatpush2.bf16.msra.mxu0 0
    %407 = vmatprep.subr.bf16.mxu0 0
    %408 = vmatpush2.bf16.msra.mxu0 0
    %409 = vmatprep.subr.bf16.mxu0 0
    %410 = vmatpush2.bf16.msra.mxu0 0
    %411 = vmatprep.subr.bf16.mxu0 0
    %412 = vmatpush2.bf16.msra.mxu0 0
    %413 = vmatprep.subr.bf16.mxu0 0
    %414 = vmatpush2.bf16.msra.mxu0 0
    %415 = vmatprep.subr.bf16.mxu0 0
    %416 = vmatpush2.bf16.msra.mxu0 0
    %417 = vmatprep.subr.bf16.mxu0 0
    %418 = vmatpush2.bf16.msra.mxu0 0
    %419 = vmatprep.mubr.bf16.mxu0 0
    %420 = vmatmul.mubr.bf16.gmra.mxu0 %v385
    %v421 = vpop.f32.mrf.mxu0
    %v422 = vadd.f32 %v371, %v421
    %v423 = vpop.f32.mrf.mxu0
    %v424 = vpop.f32.mrf.mxu0
    %v425 = vadd.f32 %v371, %v424
    %v426 = vpop.f32.mrf.mxu0
    %427 = vdwg.mxu0
    %v428 = vld [vmem:[%s8] sm:$0xf]
    %v429 = vld [vmem:[%s8 + $0x4] sm:$0xf]
    %v430 = vld [vmem:[%s8 + $0x8] sm:$0xf]
    %v431 = vld [vmem:[%s8 + $0xc] sm:$0xf]
    %v432 = vlaneseq
    %v433 = vshrl.u32 %v432, 7
    %v434 = vsub.s32 4, %v433
    %v435 = vrot.slane %v256, %v434
    %v440 = vunpack.c.l.b16 %v428
    %v441 = vunpack.c.l.b16 %v429
    %v442 = vunpack.c.l.b16 %v430
    %v443 = vunpack.c.l.b16 %v431
    %v444 = vpack.c.b16 %v441, %v440
    %v445 = vpack.c.b16 %v443, %v442
    %448 = vmatprep.subr.bf16.mxu0 0
    %449 = vmatpush1.bf16.msra.mxu0 0
    %450 = vmatprep.subr.bf16.mxu0 0
    %451 = vmatpush1.bf16.msra.mxu0 0
    %452 = vmatprep.subr.bf16.mxu0 0
    %453 = vmatpush1.bf16.msra.mxu0 0
    %454 = vmatprep.subr.bf16.mxu0 0
    %455 = vmatpush1.bf16.msra.mxu0 0
    %456 = vmatprep.subr.bf16.mxu0 0
    %457 = vmatpush1.bf16.msra.mxu0 0
    %458 = vmatprep.subr.bf16.mxu0 0
    %459 = vmatpush1.bf16.msra.mxu0 0
    %460 = vmatprep.subr.bf16.mxu0 0
    %461 = vmatpush1.bf16.msra.mxu0 %v445
    %462 = vmatprep.subr.bf16.mxu0 0
    %463 = vmatpush1.bf16.msra.mxu0 %v444
    %464 = vmatprep.subr.bf16.mxu0 0
    %465 = vmatpush2.bf16.msra.mxu0 0
    %466 = vmatprep.subr.bf16.mxu0 0
    %467 = vmatpush2.bf16.msra.mxu0 0
    %468 = vmatprep.subr.bf16.mxu0 0
    %469 = vmatpush2.bf16.msra.mxu0 0
    %470 = vmatprep.subr.bf16.mxu0 0
    %471 = vmatpush2.bf16.msra.mxu0 0
    %472 = vmatprep.subr.bf16.mxu0 0
    %473 = vmatpush2.bf16.msra.mxu0 0
    %474 = vmatprep.subr.bf16.mxu0 0
    %475 = vmatpush2.bf16.msra.mxu0 0
    %476 = vmatprep.subr.bf16.mxu0 0
    %477 = vmatpush2.bf16.msra.mxu0 0
    %478 = vmatprep.subr.bf16.mxu0 0
    %479 = vmatpush2.bf16.msra.mxu0 0
    %480 = vmatprep.mubr.bf16.mxu0 0
    %481 = vmatmul.mubr.bf16.gmra.mxu0 %v385
    %v482 = vpop.f32.mrf.mxu0
    %v483 = vadd.f32 %v435, %v482
    %v484 = vpop.f32.mrf.mxu0
    %v485 = vpop.f32.mrf.mxu0
    %v486 = vadd.f32 %v435, %v485
    %v487 = vpop.f32.mrf.mxu0
    %488 = vdwg.mxu0
    %v489 = vpack.c.bf16 %v357, %v357
    %v490 = vpack.c.bf16 %v360, %v360
    %v491 = vpack.c.bf16 %v422, %v422
    %v492 = vpack.c.bf16 %v425, %v425
    %v494 = vsel %vm258, %v489, 0
    %v497 = vsel %vm258, %v491, 0
    %499 = vmatprep.subr.bf16.mxu0 0
    %500 = vmatpush1.bf16.xpose.msra.mxu0 0
    %501 = vmatprep.subr.bf16.mxu0 0
    %502 = vmatpush1.bf16.xpose.msra.mxu0 0
    %503 = vmatprep.subr.bf16.mxu0 0
    %504 = vmatpush1.bf16.xpose.msra.mxu0 0
    %505 = vmatprep.subr.bf16.mxu0 0
    %506 = vmatpush1.bf16.xpose.msra.mxu0 0
    %507 = vmatprep.subr.bf16.mxu0 0
    %508 = vmatpush1.bf16.xpose.msra.mxu0 0
    %509 = vmatprep.subr.bf16.mxu0 0
    %510 = vmatpush1.bf16.xpose.msra.mxu0 0
    %511 = vmatprep.subr.bf16.mxu0 0
    %512 = vmatpush1.bf16.xpose.msra.mxu0 0
    %513 = vmatprep.subr.bf16.mxu0 0
    %514 = vmatpush1.bf16.xpose.msra.mxu0 %v497
    %515 = vmatprep.subr.bf16.mxu0 0
    %516 = vmatpush2.bf16.xpose.msra.mxu0 0
    %517 = vmatprep.subr.bf16.mxu0 0
    %518 = vmatpush2.bf16.xpose.msra.mxu0 0
    %519 = vmatprep.subr.bf16.mxu0 0
    %520 = vmatpush2.bf16.xpose.msra.mxu0 0
    %521 = vmatprep.subr.bf16.mxu0 0
    %522 = vmatpush2.bf16.xpose.msra.mxu0 0
    %523 = vmatprep.subr.bf16.mxu0 0
    %524 = vmatpush2.bf16.xpose.msra.mxu0 0
    %525 = vmatprep.subr.bf16.mxu0 0
    %526 = vmatpush2.bf16.xpose.msra.mxu0 0
    %527 = vmatprep.subr.bf16.mxu0 0
    %528 = vmatpush2.bf16.xpose.msra.mxu0 0
    %529 = vmatprep.subr.bf16.mxu0 0
    %530 = vmatpush2.bf16.xpose.msra.mxu0 0
    %531 = vmatprep.mubr.bf16.mxu0 0
    %532 = vmatmul.mubr.bf16.gmra.mxu0 %v494
    %v533 = vpop.f32.mrf.mxu0
    %v534 = vadd.f32 0.0, %v533
    %v535 = vpop.f32.mrf.mxu0
    %v536 = vpop.f32.mrf.mxu0
    %v537 = vpop.f32.mrf.mxu0
    %538 = vdwg.mxu0
    %v540 = vsel %vm258, %v490, 0
    %v543 = vsel %vm258, %v492, 0
    %545 = vmatprep.subr.bf16.mxu0 0
    %546 = vmatpush1.bf16.xpose.msra.mxu0 0
    %547 = vmatprep.subr.bf16.mxu0 0
    %548 = vmatpush1.bf16.xpose.msra.mxu0 0
    %549 = vmatprep.subr.bf16.mxu0 0
    %550 = vmatpush1.bf16.xpose.msra.mxu0 0
    %551 = vmatprep.subr.bf16.mxu0 0
    %552 = vmatpush1.bf16.xpose.msra.mxu0 0
    %553 = vmatprep.subr.bf16.mxu0 0
    %554 = vmatpush1.bf16.xpose.msra.mxu0 0
    %555 = vmatprep.subr.bf16.mxu0 0
    %556 = vmatpush1.bf16.xpose.msra.mxu0 0
    %557 = vmatprep.subr.bf16.mxu0 0
    %558 = vmatpush1.bf16.xpose.msra.mxu0 0
    %559 = vmatprep.subr.bf16.mxu0 0
    %560 = vmatpush1.bf16.xpose.msra.mxu0 %v543
    %561 = vmatprep.subr.bf16.mxu0 0
    %562 = vmatpush2.bf16.xpose.msra.mxu0 0
    %563 = vmatprep.subr.bf16.mxu0 0
    %564 = vmatpush2.bf16.xpose.msra.mxu0 0
    %565 = vmatprep.subr.bf16.mxu0 0
    %566 = vmatpush2.bf16.xpose.msra.mxu0 0
    %567 = vmatprep.subr.bf16.mxu0 0
    %568 = vmatpush2.bf16.xpose.msra.mxu0 0
    %569 = vmatprep.subr.bf16.mxu0 0
    %570 = vmatpush2.bf16.xpose.msra.mxu0 0
    %571 = vmatprep.subr.bf16.mxu0 0
    %572 = vmatpush2.bf16.xpose.msra.mxu0 0
    %573 = vmatprep.subr.bf16.mxu0 0
    %574 = vmatpush2.bf16.xpose.msra.mxu0 0
    %575 = vmatprep.subr.bf16.mxu0 0
    %576 = vmatpush2.bf16.xpose.msra.mxu0 0
    %577 = vmatprep.mubr.bf16.mxu0 0
    %578 = vmatmul.mubr.bf16.gmra.mxu0 %v540
    %v579 = vpop.f32.mrf.mxu0
    %v580 = vadd.f32 0.0, %v579
    %v581 = vpop.f32.mrf.mxu0
    %v582 = vpop.f32.mrf.mxu0
    %v583 = vpop.f32.mrf.mxu0
    %584 = vdwg.mxu0
    %v585 = vmul.f32 %v534, 0.17677669
    %v586 = vmul.f32 %v580, 0.17677669
    %v587 = vsel %vm255, 1, 0
    %vm588 = vcmp.eq.s32.totalorder %v587, 1
    %v589 = vsel %vm588, %v585, -1e+30
    %v590 = vsel %vm588, %v586, -1e+30
    %vm591 = vcmask 64512
    %v592 = vsel %vm591, %v589, -inf
    %593 = vmax.xlane.f32.xlu0 %v592
    %v594 = vpop.xlane.xlu0 %593
    %v595 = vsel %vm591, %v590, -inf
    %596 = vmax.xlane.f32.xlu0 %v595
    %v597 = vpop.xlane.xlu0 %596
    %v598 = vsub.f32 %v589, %v594
    %v599 = vsub.f32 %v590, %v597
    %v600 = vmul.f32 %v598, 1.442695
    %v601 = vpow.pop %v600
    %v602 = vmul.f32 %v599, 1.442695
    %v603 = vpow.pop %v602
    %v604 = vsel %vm591, %v601, 0.0
    %605 = vadd.xlane.f32.xlu0 %v604
    %v606 = vpop.xlane.xlu0 %605
    %v607 = vsel %vm591, %v603, 0.0
    %608 = vadd.xlane.f32.xlu0 %v607
    %v609 = vpop.xlane.xlu0 %608
    %v610 = vrcp.pop %v606
    %v611 = vmul.f32 %v601, %v610
    %v612 = vrcp.pop %v609
    %v613 = vmul.f32 %v603, %v612
    %v614 = vpack.c.bf16 %v611, %v611
    %v615 = vpack.c.bf16 %v613, %v613
    %v616 = vpack.c.bf16 %v483, %v483
    %v617 = vpack.c.bf16 %v486, %v486
    %v619 = vsel %vm591, %v614, 0
    %vm621 = vcmask 1043456
    %v623 = vsel %vm621, %v616, 0
    %625 = vmatprep.subr.bf16.mxu0 0
    %626 = vmatpush1.bf16.msra.mxu0 0
    %627 = vmatprep.subr.bf16.mxu0 0
    %628 = vmatpush1.bf16.msra.mxu0 0
    %629 = vmatprep.subr.bf16.mxu0 0
    %630 = vmatpush1.bf16.msra.mxu0 0
    %631 = vmatprep.subr.bf16.mxu0 0
    %632 = vmatpush1.bf16.msra.mxu0 0
    %633 = vmatprep.subr.bf16.mxu0 0
    %634 = vmatpush1.bf16.msra.mxu0 0
    %635 = vmatprep.subr.bf16.mxu0 0
    %636 = vmatpush1.bf16.msra.mxu0 0
    %637 = vmatprep.subr.bf16.mxu0 0
    %638 = vmatpush1.bf16.msra.mxu0 0
    %639 = vmatprep.subr.bf16.mxu0 0
    %640 = vmatpush1.bf16.msra.mxu0 %v623
    %641 = vmatprep.subr.bf16.mxu0 0
    %642 = vmatpush2.bf16.msra.mxu0 0
    %643 = vmatprep.subr.bf16.mxu0 0
    %644 = vmatpush2.bf16.msra.mxu0 0
    %645 = vmatprep.subr.bf16.mxu0 0
    %646 = vmatpush2.bf16.msra.mxu0 0
    %647 = vmatprep.subr.bf16.mxu0 0
    %648 = vmatpush2.bf16.msra.mxu0 0
    %649 = vmatprep.subr.bf16.mxu0 0
    %650 = vmatpush2.bf16.msra.mxu0 0
    %651 = vmatprep.subr.bf16.mxu0 0
    %652 = vmatpush2.bf16.msra.mxu0 0
    %653 = vmatprep.subr.bf16.mxu0 0
    %654 = vmatpush2.bf16.msra.mxu0 0
    %655 = vmatprep.subr.bf16.mxu0 0
    %656 = vmatpush2.bf16.msra.mxu0 0
    %657 = vmatprep.mubr.bf16.mxu0 0
    %658 = vmatmul.mubr.bf16.gmra.mxu0 %v619
    %v659 = vpop.f32.mrf.mxu0
    %v660 = vadd.f32 0.0, %v659
    %v661 = vpop.f32.mrf.mxu0
    %v662 = vpop.f32.mrf.mxu0
    %v663 = vpop.f32.mrf.mxu0
    %664 = vdwg.mxu0
    %v666 = vsel %vm591, %v615, 0
    %v669 = vsel %vm621, %v617, 0
    %671 = vmatprep.subr.bf16.mxu0 0
    %672 = vmatpush1.bf16.msra.mxu0 0
    %673 = vmatprep.subr.bf16.mxu0 0
    %674 = vmatpush1.bf16.msra.mxu0 0
    %675 = vmatprep.subr.bf16.mxu0 0
    %676 = vmatpush1.bf16.msra.mxu0 0
    %677 = vmatprep.subr.bf16.mxu0 0
    %678 = vmatpush1.bf16.msra.mxu0 0
    %679 = vmatprep.subr.bf16.mxu0 0
    %680 = vmatpush1.bf16.msra.mxu0 0
    %681 = vmatprep.subr.bf16.mxu0 0
    %682 = vmatpush1.bf16.msra.mxu0 0
    %683 = vmatprep.subr.bf16.mxu0 0
    %684 = vmatpush1.bf16.msra.mxu0 0
    %685 = vmatprep.subr.bf16.mxu0 0
    %686 = vmatpush1.bf16.msra.mxu0 %v669
    %687 = vmatprep.subr.bf16.mxu0 0
    %688 = vmatpush2.bf16.msra.mxu0 0
    %689 = vmatprep.subr.bf16.mxu0 0
    %690 = vmatpush2.bf16.msra.mxu0 0
    %691 = vmatprep.subr.bf16.mxu0 0
    %692 = vmatpush2.bf16.msra.mxu0 0
    %693 = vmatprep.subr.bf16.mxu0 0
    %694 = vmatpush2.bf16.msra.mxu0 0
    %695 = vmatprep.subr.bf16.mxu0 0
    %696 = vmatpush2.bf16.msra.mxu0 0
    %697 = vmatprep.subr.bf16.mxu0 0
    %698 = vmatpush2.bf16.msra.mxu0 0
    %699 = vmatprep.subr.bf16.mxu0 0
    %700 = vmatpush2.bf16.msra.mxu0 0
    %701 = vmatprep.subr.bf16.mxu0 0
    %702 = vmatpush2.bf16.msra.mxu0 0
    %703 = vmatprep.mubr.bf16.mxu0 0
    %704 = vmatmul.mubr.bf16.gmra.mxu0 %v666
    %v705 = vpop.f32.mrf.mxu0
    %v706 = vadd.f32 0.0, %v705
    %v707 = vpop.f32.mrf.mxu0
    %v708 = vpop.f32.mrf.mxu0
    %v709 = vpop.f32.mrf.mxu0
    %710 = vdwg.mxu0
    %v711 = vld [vmem:[%s9] sm:$0xf]
    %v712 = vld [vmem:[%s9 + $0x4] sm:$0xf]
    %v713 = vld [vmem:[%s9 + $0x8] sm:$0xf]
    %v714 = vld [vmem:[%s9 + $0xc] sm:$0xf]
    %v715 = vpack.c.bf16 %v706, %v660
    %v716 = vlaneseq
    %v717 = vshrl.u32 %v716, 7
    %v718 = vsub.s32 5, %v717
    %v719 = vrot.slane %v256, %v718
    %v724 = vunpack.c.l.b16 %v711
    %v725 = vunpack.c.l.b16 %v712
    %v726 = vunpack.c.l.b16 %v713
    %v727 = vunpack.c.l.b16 %v714
    %v728 = vpack.c.b16 %v725, %v724
    %v729 = vpack.c.b16 %v727, %v726
    %v733 = vsel %vm258, %v715, 0
    %735 = vmatprep.subr.bf16.mxu0 0
    %736 = vmatpush1.bf16.msra.mxu0 0
    %737 = vmatprep.subr.bf16.mxu0 0
    %738 = vmatpush1.bf16.msra.mxu0 0
    %739 = vmatprep.subr.bf16.mxu0 0
    %740 = vmatpush1.bf16.msra.mxu0 0
    %741 = vmatprep.subr.bf16.mxu0 0
    %742 = vmatpush1.bf16.msra.mxu0 0
    %743 = vmatprep.subr.bf16.mxu0 0
    %744 = vmatpush1.bf16.msra.mxu0 0
    %745 = vmatprep.subr.bf16.mxu0 0
    %746 = vmatpush1.bf16.msra.mxu0 0
    %747 = vmatprep.subr.bf16.mxu0 0
    %748 = vmatpush1.bf16.msra.mxu0 %v729
    %749 = vmatprep.subr.bf16.mxu0 0
    %750 = vmatpush1.bf16.msra.mxu0 %v728
    %751 = vmatprep.subr.bf16.mxu0 0
    %752 = vmatpush2.bf16.msra.mxu0 0
    %753 = vmatprep.subr.bf16.mxu0 0
    %754 = vmatpush2.bf16.msra.mxu0 0
    %755 = vmatprep.subr.bf16.mxu0 0
    %756 = vmatpush2.bf16.msra.mxu0 0
    %757 = vmatprep.subr.bf16.mxu0 0
    %758 = vmatpush2.bf16.msra.mxu0 0
    %759 = vmatprep.subr.bf16.mxu0 0
    %760 = vmatpush2.bf16.msra.mxu0 0
    %761 = vmatprep.subr.bf16.mxu0 0
    %762 = vmatpush2.bf16.msra.mxu0 0
    %763 = vmatprep.subr.bf16.mxu0 0
    %764 = vmatpush2.bf16.msra.mxu0 0
    %765 = vmatprep.subr.bf16.mxu0 0
    %766 = vmatpush2.bf16.msra.mxu0 0
    %767 = vmatprep.mubr.bf16.mxu0 0
    %768 = vmatmul.mubr.bf16.gmra.mxu0 %v733
    %v769 = vpop.f32.mrf.mxu0
    %v770 = vadd.f32 %v719, %v769
    %v771 = vpop.f32.mrf.mxu0
    %v772 = vpop.f32.mrf.mxu0
    %v773 = vadd.f32 %v719, %v772
    %v774 = vpop.f32.mrf.mxu0
    %775 = vdwg.mxu0
    %v776 = vadd.f32 %v296, %v770
    %v777 = vadd.f32 %v297, %v773
    %v778 = vsel %vm258, %v776, 0.0
    %779 = vadd.xlane.f32.xlu0 %v778
    %v780 = vpop.xlane.xlu0 %779
    %v781 = vsel %vm258, %v777, 0.0
    %782 = vadd.xlane.f32.xlu0 %v781
    %v783 = vpop.xlane.xlu0 %782
    %v784 = vmul.f32 %v780, %v265
    %v785 = vmul.f32 %v783, %v265
    %v786 = vsub.f32 %v776, %v784
    %v787 = vsub.f32 %v777, %v785
    %v788 = vmul.f32 %v786, %v786
    %v789 = vmul.f32 %v787, %v787
    %v790 = vsel %vm258, %v788, 0.0
    %791 = vadd.xlane.f32.xlu0 %v790
    %v792 = vpop.xlane.xlu0 %791
    %v793 = vsel %vm258, %v789, 0.0
    %794 = vadd.xlane.f32.xlu0 %v793
    %v795 = vpop.xlane.xlu0 %794
    %v796 = vmul.f32 %v792, %v265
    %v797 = vmul.f32 %v795, %v265
    %v798 = vadd.f32 %v796, 1e-08
    %v799 = vadd.f32 %v797, 1e-08
    %v800 = vrsqrt.pop %v798
    %v801 = vrsqrt.pop %v799
    %v802 = vmul.f32 %v786, %v800
    %v803 = vmul.f32 %v787, %v801
    %v804 = vlaneseq
    %v805 = vshrl.u32 %v804, 7
    %v806 = vsub.s32 6, %v805
    %v807 = vrot.slane %v256, %v806
    %v808 = vmul.f32 %v802, %v807
    %v809 = vmul.f32 %v803, %v807
    %v810 = vlaneseq
    %v811 = vshrl.u32 %v810, 7
    %v812 = vsub.s32 7, %v811
    %v813 = vrot.slane %v256, %v812
    %v814 = vadd.f32 %v808, %v813
    %v815 = vadd.f32 %v809, %v813
    %v816 = vld [vmem:[#allocation7] sm:$0xf]
    %v817 = vld [vmem:[#allocation7 + $0x4] sm:$0xf]
    %v818 = vld [vmem:[#allocation7 + $0x8] sm:$0xf]
    %v819 = vld [vmem:[#allocation7 + $0xc] sm:$0xf]
    %v820 = vpack.c.bf16 %v815, %v814
    %v821 = vlaneseq
    %v822 = vshrl.u32 %v821, 7
    %v823 = vsub.s32 0, %v822
    %v824 = vrot.slane %v257, %v823
    %v829 = vunpack.c.l.b16 %v816
    %v830 = vunpack.c.l.b16 %v817
    %v831 = vunpack.c.l.b16 %v818
    %v832 = vunpack.c.l.b16 %v819
    %v833 = vpack.c.b16 %v830, %v829
    %v834 = vpack.c.b16 %v832, %v831
    %v838 = vsel %vm258, %v820, 0
    %840 = vmatprep.subr.bf16.mxu0 0
    %841 = vmatpush1.bf16.msra.mxu0 0
    %842 = vmatprep.subr.bf16.mxu0 0
    %843 = vmatpush1.bf16.msra.mxu0 0
    %844 = vmatprep.subr.bf16.mxu0 0
    %845 = vmatpush1.bf16.msra.mxu0 0
    %846 = vmatprep.subr.bf16.mxu0 0
    %847 = vmatpush1.bf16.msra.mxu0 0
    %848 = vmatprep.subr.bf16.mxu0 0
    %849 = vmatpush1.bf16.msra.mxu0 0
    %850 = vmatprep.subr.bf16.mxu0 0
    %851 = vmatpush1.bf16.msra.mxu0 0
    %852 = vmatprep.subr.bf16.mxu0 0
    %853 = vmatpush1.bf16.msra.mxu0 %v834
    %854 = vmatprep.subr.bf16.mxu0 0
    %855 = vmatpush1.bf16.msra.mxu0 %v833
    %856 = vmatprep.subr.bf16.mxu0 0
    %857 = vmatpush2.bf16.msra.mxu0 0
    %858 = vmatprep.subr.bf16.mxu0 0
    %859 = vmatpush2.bf16.msra.mxu0 0
    %860 = vmatprep.subr.bf16.mxu0 0
    %861 = vmatpush2.bf16.msra.mxu0 0
    %862 = vmatprep.subr.bf16.mxu0 0
    %863 = vmatpush2.bf16.msra.mxu0 0
    %864 = vmatprep.subr.bf16.mxu0 0
    %865 = vmatpush2.bf16.msra.mxu0 0
    %866 = vmatprep.subr.bf16.mxu0 0
    %867 = vmatpush2.bf16.msra.mxu0 0
    %868 = vmatprep.subr.bf16.mxu0 0
    %869 = vmatpush2.bf16.msra.mxu0 0
    %870 = vmatprep.subr.bf16.mxu0 0
    %871 = vmatpush2.bf16.msra.mxu0 0
    %872 = vmatprep.mubr.bf16.mxu0 0
    %873 = vmatmul.mubr.bf16.gmra.mxu0 %v838
    %v874 = vpop.f32.mrf.mxu0
    %v875 = vadd.f32 %v824, %v874
    %v876 = vpop.f32.mrf.mxu0
    %v877 = vpop.f32.mrf.mxu0
    %v878 = vadd.f32 %v824, %v877
    %v879 = vpop.f32.mrf.mxu0
    %880 = vdwg.mxu0
    %v881 = vmax.f32 %v875, 0.0
    %v882 = vmax.f32 %v878, 0.0
    %v883 = vld [vmem:[#allocation8] sm:$0xf]
    %v884 = vld [vmem:[#allocation8 + $0x4] sm:$0xf]
    %v885 = vld [vmem:[#allocation8 + $0x8] sm:$0xf]
    %v886 = vld [vmem:[#allocation8 + $0xc] sm:$0xf]
    %v887 = vpack.c.bf16 %v882, %v881
    %v888 = vlaneseq
    %v889 = vshrl.u32 %v888, 7
    %v890 = vsub.s32 1, %v889
    %v891 = vrot.slane %v257, %v890
    %v896 = vunpack.c.l.b16 %v883
    %v897 = vunpack.c.l.b16 %v884
    %v898 = vunpack.c.l.b16 %v885
    %v899 = vunpack.c.l.b16 %v886
    %v900 = vpack.c.b16 %v897, %v896
    %v901 = vpack.c.b16 %v899, %v898
    %v905 = vsel %vm258, %v887, 0
    %907 = vmatprep.subr.bf16.mxu0 0
    %908 = vmatpush1.bf16.msra.mxu0 0
    %909 = vmatprep.subr.bf16.mxu0 0
    %910 = vmatpush1.bf16.msra.mxu0 0
    %911 = vmatprep.subr.bf16.mxu0 0
    %912 = vmatpush1.bf16.msra.mxu0 0
    %913 = vmatprep.subr.bf16.mxu0 0
    %914 = vmatpush1.bf16.msra.mxu0 0
    %915 = vmatprep.subr.bf16.mxu0 0
    %916 = vmatpush1.bf16.msra.mxu0 0
    %917 = vmatprep.subr.bf16.mxu0 0
    %918 = vmatpush1.bf16.msra.mxu0 0
    %919 = vmatprep.subr.bf16.mxu0 0
    %920 = vmatpush1.bf16.msra.mxu0 %v901
    %921 = vmatprep.subr.bf16.mxu0 0
    %922 = vmatpush1.bf16.msra.mxu0 %v900
    %923 = vmatprep.subr.bf16.mxu0 0
    %924 = vmatpush2.bf16.msra.mxu0 0
    %925 = vmatprep.subr.bf16.mxu0 0
    %926 = vmatpush2.bf16.msra.mxu0 0
    %927 = vmatprep.subr.bf16.mxu0 0
    %928 = vmatpush2.bf16.msra.mxu0 0
    %929 = vmatprep.subr.bf16.mxu0 0
    %930 = vmatpush2.bf16.msra.mxu0 0
    %931 = vmatprep.subr.bf16.mxu0 0
    %932 = vmatpush2.bf16.msra.mxu0 0
    %933 = vmatprep.subr.bf16.mxu0 0
    %934 = vmatpush2.bf16.msra.mxu0 0
    %935 = vmatprep.subr.bf16.mxu0 0
    %936 = vmatpush2.bf16.msra.mxu0 0
    %937 = vmatprep.subr.bf16.mxu0 0
    %938 = vmatpush2.bf16.msra.mxu0 0
    %939 = vmatprep.mubr.bf16.mxu0 0
    %940 = vmatmul.mubr.bf16.gmra.mxu0 %v905
    %v941 = vpop.f32.mrf.mxu0
    %v942 = vadd.f32 %v891, %v941
    %v943 = vpop.f32.mrf.mxu0
    %v944 = vpop.f32.mrf.mxu0
    %v945 = vadd.f32 %v891, %v944
    %v946 = vpop.f32.mrf.mxu0
    %947 = vdwg.mxu0
    %v948 = vadd.f32 %v814, %v942
    %v949 = vadd.f32 %v815, %v945
    %v950 = vmul.f32 %v948, %v249
    %v951 = vmul.f32 %v949, %v250
    %s952 = scalar_lea.vmem [#allocation10], 16
    %v953 = vld [vmem:[%s952] sm:$0xff]
    %v954 = vld [vmem:[%s952 + $0x8] sm:$0xff]
    %v955 = vsel %vm258, %v950, 0.0
    %956 = vadd.xlane.f32.xlu0 %v955
    %v957 = vpop.xlane.xlu0 %956
    %v958 = vsel %vm258, %v951, 0.0
    %959 = vadd.xlane.f32.xlu0 %v958
    %v960 = vpop.xlane.xlu0 %959
    %v961 = vmul.f32 %v957, %v265
    %v962 = vmul.f32 %v960, %v265
    %v963 = vsub.f32 %v950, %v961
    %v964 = vsub.f32 %v951, %v962
    %v965 = vmul.f32 %v963, %v963
    %v966 = vmul.f32 %v964, %v964
    %v967 = vsel %vm258, %v965, 0.0
    %968 = vadd.xlane.f32.xlu0 %v967
    %v969 = vpop.xlane.xlu0 %968
    %v970 = vsel %vm258, %v966, 0.0
    %971 = vadd.xlane.f32.xlu0 %v970
    %v972 = vpop.xlane.xlu0 %971
    %v973 = vmul.f32 %v969, %v265
    %v974 = vmul.f32 %v972, %v265
    %v975 = vadd.f32 %v973, 1e-08
    %v976 = vadd.f32 %v974, 1e-08
    %v977 = vrsqrt.pop %v975
    %v978 = vrsqrt.pop %v976
    %v979 = vmul.f32 %v963, %v977
    %v980 = vmul.f32 %v964, %v978
    %v981 = vlaneseq
    %v982 = vshrl.u32 %v981, 7
    %v983 = vsub.s32 0, %v982
    %v984 = vrot.slane %v953, %v983
    %v985 = vmul.f32 %v979, %v984
    %v986 = vmul.f32 %v980, %v984
    %v987 = vlaneseq
    %v988 = vshrl.u32 %v987, 7
    %v989 = vsub.s32 1, %v988
    %v990 = vrot.slane %v953, %v989
    %v991 = vadd.f32 %v985, %v990
    %v992 = vadd.f32 %v986, %v990
    %s993 = scalar_lea.vmem %s6, 16
    %v994 = vld [vmem:[%s993] sm:$0xf]
    %v995 = vld [vmem:[%s993 + $0x4] sm:$0xf]
    %v996 = vld [vmem:[%s993 + $0x8] sm:$0xf]
    %v997 = vld [vmem:[%s993 + $0xc] sm:$0xf]
    %v998 = vpack.c.bf16 %v992, %v991
    %v999 = vlaneseq
    %v1000 = vshrl.u32 %v999, 7
    %v1001 = vsub.s32 2, %v1000
    %v1002 = vrot.slane %v953, %v1001
    %v1007 = vunpack.c.l.b16 %v994
    %v1008 = vunpack.c.l.b16 %v995
    %v1009 = vunpack.c.l.b16 %v996
    %v1010 = vunpack.c.l.b16 %v997
    %v1011 = vpack.c.b16 %v1008, %v1007
    %v1012 = vpack.c.b16 %v1010, %v1009
    %v1016 = vsel %vm258, %v998, 0
    %1018 = vmatprep.subr.bf16.mxu0 0
    %1019 = vmatpush1.bf16.msra.mxu0 0
    %1020 = vmatprep.subr.bf16.mxu0 0
    %1021 = vmatpush1.bf16.msra.mxu0 0
    %1022 = vmatprep.subr.bf16.mxu0 0
    %1023 = vmatpush1.bf16.msra.mxu0 0
    %1024 = vmatprep.subr.bf16.mxu0 0
    %1025 = vmatpush1.bf16.msra.mxu0 0
    %1026 = vmatprep.subr.bf16.mxu0 0
    %1027 = vmatpush1.bf16.msra.mxu0 0
    %1028 = vmatprep.subr.bf16.mxu0 0
    %1029 = vmatpush1.bf16.msra.mxu0 0
    %1030 = vmatprep.subr.bf16.mxu0 0
    %1031 = vmatpush1.bf16.msra.mxu0 %v1012
    %1032 = vmatprep.subr.bf16.mxu0 0
    %1033 = vmatpush1.bf16.msra.mxu0 %v1011
    %1034 = vmatprep.subr.bf16.mxu0 0
    %1035 = vmatpush2.bf16.msra.mxu0 0
    %1036 = vmatprep.subr.bf16.mxu0 0
    %1037 = vmatpush2.bf16.msra.mxu0 0
    %1038 = vmatprep.subr.bf16.mxu0 0
    %1039 = vmatpush2.bf16.msra.mxu0 0
    %1040 = vmatprep.subr.bf16.mxu0 0
    %1041 = vmatpush2.bf16.msra.mxu0 0
    %1042 = vmatprep.subr.bf16.mxu0 0
    %1043 = vmatpush2.bf16.msra.mxu0 0
    %1044 = vmatprep.subr.bf16.mxu0 0
    %1045 = vmatpush2.bf16.msra.mxu0 0
    %1046 = vmatprep.subr.bf16.mxu0 0
    %1047 = vmatpush2.bf16.msra.mxu0 0
    %1048 = vmatprep.subr.bf16.mxu0 0
    %1049 = vmatpush2.bf16.msra.mxu0 0
    %1050 = vmatprep.mubr.bf16.mxu0 0
    %1051 = vmatmul.mubr.bf16.gmra.mxu0 %v1016
    %v1052 = vpop.f32.mrf.mxu0
    %v1053 = vadd.f32 %v1002, %v1052
    %v1054 = vpop.f32.mrf.mxu0
    %v1055 = vpop.f32.mrf.mxu0
    %v1056 = vadd.f32 %v1002, %v1055
    %v1057 = vpop.f32.mrf.mxu0
    %1058 = vdwg.mxu0
    %s1059 = scalar_lea.vmem %s7, 16
    %v1060 = vld [vmem:[%s1059] sm:$0xf]
    %v1061 = vld [vmem:[%s1059 + $0x4] sm:$0xf]
    %v1062 = vld [vmem:[%s1059 + $0x8] sm:$0xf]
    %v1063 = vld [vmem:[%s1059 + $0xc] sm:$0xf]
    %v1064 = vpack.c.bf16 %v951, %v950
    %v1065 = vlaneseq
    %v1066 = vshrl.u32 %v1065, 7
    %v1067 = vsub.s32 3, %v1066
    %v1068 = vrot.slane %v953, %v1067
    %v1073 = vunpack.c.l.b16 %v1060
    %v1074 = vunpack.c.l.b16 %v1061
    %v1075 = vunpack.c.l.b16 %v1062
    %v1076 = vunpack.c.l.b16 %v1063
    %v1077 = vpack.c.b16 %v1074, %v1073
    %v1078 = vpack.c.b16 %v1076, %v1075
    %v1082 = vsel %vm258, %v1064, 0
    %1084 = vmatprep.subr.bf16.mxu0 0
    %1085 = vmatpush1.bf16.msra.mxu0 0
    %1086 = vmatprep.subr.bf16.mxu0 0
    %1087 = vmatpush1.bf16.msra.mxu0 0
    %1088 = vmatprep.subr.bf16.mxu0 0
    %1089 = vmatpush1.bf16.msra.mxu0 0
    %1090 = vmatprep.subr.bf16.mxu0 0
    %1091 = vmatpush1.bf16.msra.mxu0 0
    %1092 = vmatprep.subr.bf16.mxu0 0
    %1093 = vmatpush1.bf16.msra.mxu0 0
    %1094 = vmatprep.subr.bf16.mxu0 0
    %1095 = vmatpush1.bf16.msra.mxu0 0
    %1096 = vmatprep.subr.bf16.mxu0 0
    %1097 = vmatpush1.bf16.msra.mxu0 %v1078
    %1098 = vmatprep.subr.bf16.mxu0 0
    %1099 = vmatpush1.bf16.msra.mxu0 %v1077
    %1100 = vmatprep.subr.bf16.mxu0 0
    %1101 = vmatpush2.bf16.msra.mxu0 0
    %1102 = vmatprep.subr.bf16.mxu0 0
    %1103 = vmatpush2.bf16.msra.mxu0 0
    %1104 = vmatprep.subr.bf16.mxu0 0
    %1105 = vmatpush2.bf16.msra.mxu0 0
    %1106 = vmatprep.subr.bf16.mxu0 0
    %1107 = vmatpush2.bf16.msra.mxu0 0
    %1108 = vmatprep.subr.bf16.mxu0 0
    %1109 = vmatpush2.bf16.msra.mxu0 0
    %1110 = vmatprep.subr.bf16.mxu0 0
    %1111 = vmatpush2.bf16.msra.mxu0 0
    %1112 = vmatprep.subr.bf16.mxu0 0
    %1113 = vmatpush2.bf16.msra.mxu0 0
    %1114 = vmatprep.subr.bf16.mxu0 0
    %1115 = vmatpush2.bf16.msra.mxu0 0
    %1116 = vmatprep.mubr.bf16.mxu0 0
    %1117 = vmatmul.mubr.bf16.gmra.mxu0 %v1082
    %v1118 = vpop.f32.mrf.mxu0
    %v1119 = vadd.f32 %v1068, %v1118
    %v1120 = vpop.f32.mrf.mxu0
    %v1121 = vpop.f32.mrf.mxu0
    %v1122 = vadd.f32 %v1068, %v1121
    %v1123 = vpop.f32.mrf.mxu0
    %1124 = vdwg.mxu0
    %s1125 = scalar_lea.vmem %s8, 16
    %v1126 = vld [vmem:[%s1125] sm:$0xf]
    %v1127 = vld [vmem:[%s1125 + $0x4] sm:$0xf]
    %v1128 = vld [vmem:[%s1125 + $0x8] sm:$0xf]
    %v1129 = vld [vmem:[%s1125 + $0xc] sm:$0xf]
    %v1130 = vlaneseq
    %v1131 = vshrl.u32 %v1130, 7
    %v1132 = vsub.s32 4, %v1131
    %v1133 = vrot.slane %v953, %v1132
    %v1138 = vunpack.c.l.b16 %v1126
    %v1139 = vunpack.c.l.b16 %v1127
    %v1140 = vunpack.c.l.b16 %v1128
    %v1141 = vunpack.c.l.b16 %v1129
    %v1142 = vpack.c.b16 %v1139, %v1138
    %v1143 = vpack.c.b16 %v1141, %v1140
    %1146 = vmatprep.subr.bf16.mxu0 0
    %1147 = vmatpush1.bf16.msra.mxu0 0
    %1148 = vmatprep.subr.bf16.mxu0 0
    %1149 = vmatpush1.bf16.msra.mxu0 0
    %1150 = vmatprep.subr.bf16.mxu0 0
    %1151 = vmatpush1.bf16.msra.mxu0 0
    %1152 = vmatprep.subr.bf16.mxu0 0
    %1153 = vmatpush1.bf16.msra.mxu0 0
    %1154 = vmatprep.subr.bf16.mxu0 0
    %1155 = vmatpush1.bf16.msra.mxu0 0
    %1156 = vmatprep.subr.bf16.mxu0 0
    %1157 = vmatpush1.bf16.msra.mxu0 0
    %1158 = vmatprep.subr.bf16.mxu0 0
    %1159 = vmatpush1.bf16.msra.mxu0 %v1143
    %1160 = vmatprep.subr.bf16.mxu0 0
    %1161 = vmatpush1.bf16.msra.mxu0 %v1142
    %1162 = vmatprep.subr.bf16.mxu0 0
    %1163 = vmatpush2.bf16.msra.mxu0 0
    %1164 = vmatprep.subr.bf16.mxu0 0
    %1165 = vmatpush2.bf16.msra.mxu0 0
    %1166 = vmatprep.subr.bf16.mxu0 0
    %1167 = vmatpush2.bf16.msra.mxu0 0
    %1168 = vmatprep.subr.bf16.mxu0 0
    %1169 = vmatpush2.bf16.msra.mxu0 0
    %1170 = vmatprep.subr.bf16.mxu0 0
    %1171 = vmatpush2.bf16.msra.mxu0 0
    %1172 = vmatprep.subr.bf16.mxu0 0
    %1173 = vmatpush2.bf16.msra.mxu0 0
    %1174 = vmatprep.subr.bf16.mxu0 0
    %1175 = vmatpush2.bf16.msra.mxu0 0
    %1176 = vmatprep.subr.bf16.mxu0 0
    %1177 = vmatpush2.bf16.msra.mxu0 0
    %1178 = vmatprep.mubr.bf16.mxu0 0
    %1179 = vmatmul.mubr.bf16.gmra.mxu0 %v1082
    %v1180 = vpop.f32.mrf.mxu0
    %v1181 = vadd.f32 %v1133, %v1180
    %v1182 = vpop.f32.mrf.mxu0
    %v1183 = vpop.f32.mrf.mxu0
    %v1184 = vadd.f32 %v1133, %v1183
    %v1185 = vpop.f32.mrf.mxu0
    %1186 = vdwg.mxu0
    %v1187 = vpack.c.bf16 %v1053, %v1053
    %v1188 = vpack.c.bf16 %v1056, %v1056
    %v1189 = vpack.c.bf16 %v1119, %v1119
    %v1190 = vpack.c.bf16 %v1122, %v1122
    %v1192 = vsel %vm258, %v1187, 0
    %v1195 = vsel %vm258, %v1189, 0
    %1197 = vmatprep.subr.bf16.mxu0 0
    %1198 = vmatpush1.bf16.xpose.msra.mxu0 0
    %1199 = vmatprep.subr.bf16.mxu0 0
    %1200 = vmatpush1.bf16.xpose.msra.mxu0 0
    %1201 = vmatprep.subr.bf16.mxu0 0
    %1202 = vmatpush1.bf16.xpose.msra.mxu0 0
    %1203 = vmatprep.subr.bf16.mxu0 0
    %1204 = vmatpush1.bf16.xpose.msra.mxu0 0
    %1205 = vmatprep.subr.bf16.mxu0 0
    %1206 = vmatpush1.bf16.xpose.msra.mxu0 0
    %1207 = vmatprep.subr.bf16.mxu0 0
    %1208 = vmatpush1.bf16.xpose.msra.mxu0 0
    %1209 = vmatprep.subr.bf16.mxu0 0
    %1210 = vmatpush1.bf16.xpose.msra.mxu0 0
    %1211 = vmatprep.subr.bf16.mxu0 0
    %1212 = vmatpush1.bf16.xpose.msra.mxu0 %v1195
    %1213 = vmatprep.subr.bf16.mxu0 0
    %1214 = vmatpush2.bf16.xpose.msra.mxu0 0
    %1215 = vmatprep.subr.bf16.mxu0 0
    %1216 = vmatpush2.bf16.xpose.msra.mxu0 0
    %1217 = vmatprep.subr.bf16.mxu0 0
    %1218 = vmatpush2.bf16.xpose.msra.mxu0 0
    %1219 = vmatprep.subr.bf16.mxu0 0
    %1220 = vmatpush2.bf16.xpose.msra.mxu0 0
    %1221 = vmatprep.subr.bf16.mxu0 0
    %1222 = vmatpush2.bf16.xpose.msra.mxu0 0
    %1223 = vmatprep.subr.bf16.mxu0 0
    %1224 = vmatpush2.bf16.xpose.msra.mxu0 0
    %1225 = vmatprep.subr.bf16.mxu0 0
    %1226 = vmatpush2.bf16.xpose.msra.mxu0 0
    %1227 = vmatprep.subr.bf16.mxu0 0
    %1228 = vmatpush2.bf16.xpose.msra.mxu0 0
    %1229 = vmatprep.mubr.bf16.mxu0 0
    %1230 = vmatmul.mubr.bf16.gmra.mxu0 %v1192
    %v1231 = vpop.f32.mrf.mxu0
    %v1232 = vadd.f32 0.0, %v1231
    %v1233 = vpop.f32.mrf.mxu0
    %v1234 = vpop.f32.mrf.mxu0
    %v1235 = vpop.f32.mrf.mxu0
    %1236 = vdwg.mxu0
    %v1238 = vsel %vm258, %v1188, 0
    %v1241 = vsel %vm258, %v1190, 0
    %1243 = vmatprep.subr.bf16.mxu0 0
    %1244 = vmatpush1.bf16.xpose.msra.mxu0 0
    %1245 = vmatprep.subr.bf16.mxu0 0
    %1246 = vmatpush1.bf16.xpose.msra.mxu0 0
    %1247 = vmatprep.subr.bf16.mxu0 0
    %1248 = vmatpush1.bf16.xpose.msra.mxu0 0
    %1249 = vmatprep.subr.bf16.mxu0 0
    %1250 = vmatpush1.bf16.xpose.msra.mxu0 0
    %1251 = vmatprep.subr.bf16.mxu0 0
    %1252 = vmatpush1.bf16.xpose.msra.mxu0 0
    %1253 = vmatprep.subr.bf16.mxu0 0
    %1254 = vmatpush1.bf16.xpose.msra.mxu0 0
    %1255 = vmatprep.subr.bf16.mxu0 0
    %1256 = vmatpush1.bf16.xpose.msra.mxu0 0
    %1257 = vmatprep.subr.bf16.mxu0 0
    %1258 = vmatpush1.bf16.xpose.msra.mxu0 %v1241
    %1259 = vmatprep.subr.bf16.mxu0 0
    %1260 = vmatpush2.bf16.xpose.msra.mxu0 0
    %1261 = vmatprep.subr.bf16.mxu0 0
    %1262 = vmatpush2.bf16.xpose.msra.mxu0 0
    %1263 = vmatprep.subr.bf16.mxu0 0
    %1264 = vmatpush2.bf16.xpose.msra.mxu0 0
    %1265 = vmatprep.subr.bf16.mxu0 0
    %1266 = vmatpush2.bf16.xpose.msra.mxu0 0
    %1267 = vmatprep.subr.bf16.mxu0 0
    %1268 = vmatpush2.bf16.xpose.msra.mxu0 0
    %1269 = vmatprep.subr.bf16.mxu0 0
    %1270 = vmatpush2.bf16.xpose.msra.mxu0 0
    %1271 = vmatprep.subr.bf16.mxu0 0
    %1272 = vmatpush2.bf16.xpose.msra.mxu0 0
    %1273 = vmatprep.subr.bf16.mxu0 0
    %1274 = vmatpush2.bf16.xpose.msra.mxu0 0
    %1275 = vmatprep.mubr.bf16.mxu0 0
    %1276 = vmatmul.mubr.bf16.gmra.mxu0 %v1238
    %v1277 = vpop.f32.mrf.mxu0
    %v1278 = vadd.f32 0.0, %v1277
    %v1279 = vpop.f32.mrf.mxu0
    %v1280 = vpop.f32.mrf.mxu0
    %v1281 = vpop.f32.mrf.mxu0
    %1282 = vdwg.mxu0
    %v1283 = vmul.f32 %v1232, 0.17677669
    %v1284 = vmul.f32 %v1278, 0.17677669
    %v1285 = vsel %vm588, %v1283, -1e+30
    %v1286 = vsel %vm588, %v1284, -1e+30
    %v1287 = vsel %vm591, %v1285, -inf
    %1288 = vmax.xlane.f32.xlu0 %v1287
    %v1289 = vpop.xlane.xlu0 %1288
    %v1290 = vsel %vm591, %v1286, -inf
    %1291 = vmax.xlane.f32.xlu0 %v1290
    %v1292 = vpop.xlane.xlu0 %1291
    %v1293 = vsub.f32 %v1285, %v1289
    %v1294 = vsub.f32 %v1286, %v1292
    %v1295 = vmul.f32 %v1293, 1.442695
    %v1296 = vpow.pop %v1295
    %v1297 = vmul.f32 %v1294, 1.442695
    %v1298 = vpow.pop %v1297
    %v1299 = vsel %vm591, %v1296, 0.0
    %1300 = vadd.xlane.f32.xlu0 %v1299
    %v1301 = vpop.xlane.xlu0 %1300
    %v1302 = vsel %vm591, %v1298, 0.0
    %1303 = vadd.xlane.f32.xlu0 %v1302
    %v1304 = vpop.xlane.xlu0 %1303
    %v1305 = vrcp.pop %v1301
    %v1306 = vmul.f32 %v1296, %v1305
    %v1307 = vrcp.pop %v1304
    %v1308 = vmul.f32 %v1298, %v1307
    %v1309 = vpack.c.bf16 %v1306, %v1306
    %v1310 = vpack.c.bf16 %v1308, %v1308
    %v1311 = vpack.c.bf16 %v1181, %v1181
    %v1312 = vpack.c.bf16 %v1184, %v1184
    %v1314 = vsel %vm591, %v1309, 0
    %v1317 = vsel %vm621, %v1311, 0
    %1319 = vmatprep.subr.bf16.mxu0 0
    %1320 = vmatpush1.bf16.msra.mxu0 0
    %1321 = vmatprep.subr.bf16.mxu0 0
    %1322 = vmatpush1.bf16.msra.mxu0 0
    %1323 = vmatprep.subr.bf16.mxu0 0
    %1324 = vmatpush1.bf16.msra.mxu0 0
    %1325 = vmatprep.subr.bf16.mxu0 0
    %1326 = vmatpush1.bf16.msra.mxu0 0
    %1327 = vmatprep.subr.bf16.mxu0 0
    %1328 = vmatpush1.bf16.msra.mxu0 0
    %1329 = vmatprep.subr.bf16.mxu0 0
    %1330 = vmatpush1.bf16.msra.mxu0 0
    %1331 = vmatprep.subr.bf16.mxu0 0
    %1332 = vmatpush1.bf16.msra.mxu0 0
    %1333 = vmatprep.subr.bf16.mxu0 0
    %1334 = vmatpush1.bf16.msra.mxu0 %v1317
    %1335 = vmatprep.subr.bf16.mxu0 0
    %1336 = vmatpush2.bf16.msra.mxu0 0
    %1337 = vmatprep.subr.bf16.mxu0 0
    %1338 = vmatpush2.bf16.msra.mxu0 0
    %1339 = vmatprep.subr.bf16.mxu0 0
    %1340 = vmatpush2.bf16.msra.mxu0 0
    %1341 = vmatprep.subr.bf16.mxu0 0
    %1342 = vmatpush2.bf16.msra.mxu0 0
    %1343 = vmatprep.subr.bf16.mxu0 0
    %1344 = vmatpush2.bf16.msra.mxu0 0
    %1345 = vmatprep.subr.bf16.mxu0 0
    %1346 = vmatpush2.bf16.msra.mxu0 0
    %1347 = vmatprep.subr.bf16.mxu0 0
    %1348 = vmatpush2.bf16.msra.mxu0 0
    %1349 = vmatprep.subr.bf16.mxu0 0
    %1350 = vmatpush2.bf16.msra.mxu0 0
    %1351 = vmatprep.mubr.bf16.mxu0 0
    %1352 = vmatmul.mubr.bf16.gmra.mxu0 %v1314
    %v1353 = vpop.f32.mrf.mxu0
    %v1354 = vadd.f32 0.0, %v1353
    %v1355 = vpop.f32.mrf.mxu0
    %v1356 = vpop.f32.mrf.mxu0
    %v1357 = vpop.f32.mrf.mxu0
    %1358 = vdwg.mxu0
    %v1360 = vsel %vm591, %v1310, 0
    %v1363 = vsel %vm621, %v1312, 0
    %1365 = vmatprep.subr.bf16.mxu0 0
    %1366 = vmatpush1.bf16.msra.mxu0 0
    %1367 = vmatprep.subr.bf16.mxu0 0
    %1368 = vmatpush1.bf16.msra.mxu0 0
    %1369 = vmatprep.subr.bf16.mxu0 0
    %1370 = vmatpush1.bf16.msra.mxu0 0
    %1371 = vmatprep.subr.bf16.mxu0 0
    %1372 = vmatpush1.bf16.msra.mxu0 0
    %1373 = vmatprep.subr.bf16.mxu0 0
    %1374 = vmatpush1.bf16.msra.mxu0 0
    %1375 = vmatprep.subr.bf16.mxu0 0
    %1376 = vmatpush1.bf16.msra.mxu0 0
    %1377 = vmatprep.subr.bf16.mxu0 0
    %1378 = vmatpush1.bf16.msra.mxu0 0
    %1379 = vmatprep.subr.bf16.mxu0 0
    %1380 = vmatpush1.bf16.msra.mxu0 %v1363
    %1381 = vmatprep.subr.bf16.mxu0 0
    %1382 = vmatpush2.bf16.msra.mxu0 0
    %1383 = vmatprep.subr.bf16.mxu0 0
    %1384 = vmatpush2.bf16.msra.mxu0 0
    %1385 = vmatprep.subr.bf16.mxu0 0
    %1386 = vmatpush2.bf16.msra.mxu0 0
    %1387 = vmatprep.subr.bf16.mxu0 0
    %1388 = vmatpush2.bf16.msra.mxu0 0
    %1389 = vmatprep.subr.bf16.mxu0 0
    %1390 = vmatpush2.bf16.msra.mxu0 0
    %1391 = vmatprep.subr.bf16.mxu0 0
    %1392 = vmatpush2.bf16.msra.mxu0 0
    %1393 = vmatprep.subr.bf16.mxu0 0
    %1394 = vmatpush2.bf16.msra.mxu0 0
    %1395 = vmatprep.subr.bf16.mxu0 0
    %1396 = vmatpush2.bf16.msra.mxu0 0
    %1397 = vmatprep.mubr.bf16.mxu0 0
    %1398 = vmatmul.mubr.bf16.gmra.mxu0 %v1360
    %v1399 = vpop.f32.mrf.mxu0
    %v1400 = vadd.f32 0.0, %v1399
    %v1401 = vpop.f32.mrf.mxu0
    %v1402 = vpop.f32.mrf.mxu0
    %v1403 = vpop.f32.mrf.mxu0
    %1404 = vdwg.mxu0
    %s1405 = scalar_lea.vmem %s9, 16
    %v1406 = vld [vmem:[%s1405] sm:$0xf]
    %v1407 = vld [vmem:[%s1405 + $0x4] sm:$0xf]
    %v1408 = vld [vmem:[%s1405 + $0x8] sm:$0xf]
    %v1409 = vld [vmem:[%s1405 + $0xc] sm:$0xf]
    %v1410 = vpack.c.bf16 %v1400, %v1354
    %v1411 = vlaneseq
    %v1412 = vshrl.u32 %v1411, 7
    %v1413 = vsub.s32 5, %v1412
    %v1414 = vrot.slane %v953, %v1413
    %v1419 = vunpack.c.l.b16 %v1406
    %v1420 = vunpack.c.l.b16 %v1407
    %v1421 = vunpack.c.l.b16 %v1408
    %v1422 = vunpack.c.l.b16 %v1409
    %v1423 = vpack.c.b16 %v1420, %v1419
    %v1424 = vpack.c.b16 %v1422, %v1421
    %v1428 = vsel %vm258, %v1410, 0
    %1430 = vmatprep.subr.bf16.mxu0 0
    %1431 = vmatpush1.bf16.msra.mxu0 0
    %1432 = vmatprep.subr.bf16.mxu0 0
    %1433 = vmatpush1.bf16.msra.mxu0 0
    %1434 = vmatprep.subr.bf16.mxu0 0
    %1435 = vmatpush1.bf16.msra.mxu0 0
    %1436 = vmatprep.subr.bf16.mxu0 0
    %1437 = vmatpush1.bf16.msra.mxu0 0
    %1438 = vmatprep.subr.bf16.mxu0 0
    %1439 = vmatpush1.bf16.msra.mxu0 0
    %1440 = vmatprep.subr.bf16.mxu0 0
    %1441 = vmatpush1.bf16.msra.mxu0 0
    %1442 = vmatprep.subr.bf16.mxu0 0
    %1443 = vmatpush1.bf16.msra.mxu0 %v1424
    %1444 = vmatprep.subr.bf16.mxu0 0
    %1445 = vmatpush1.bf16.msra.mxu0 %v1423
    %1446 = vmatprep.subr.bf16.mxu0 0
    %1447 = vmatpush2.bf16.msra.mxu0 0
    %1448 = vmatprep.subr.bf16.mxu0 0
    %1449 = vmatpush2.bf16.msra.mxu0 0
    %1450 = vmatprep.subr.bf16.mxu0 0
    %1451 = vmatpush2.bf16.msra.mxu0 0
    %1452 = vmatprep.subr.bf16.mxu0 0
    %1453 = vmatpush2.bf16.msra.mxu0 0
    %1454 = vmatprep.subr.bf16.mxu0 0
    %1455 = vmatpush2.bf16.msra.mxu0 0
    %1456 = vmatprep.subr.bf16.mxu0 0
    %1457 = vmatpush2.bf16.msra.mxu0 0
    %1458 = vmatprep.subr.bf16.mxu0 0
    %1459 = vmatpush2.bf16.msra.mxu0 0
    %1460 = vmatprep.subr.bf16.mxu0 0
    %1461 = vmatpush2.bf16.msra.mxu0 0
    %1462 = vmatprep.mubr.bf16.mxu0 0
    %1463 = vmatmul.mubr.bf16.gmra.mxu0 %v1428
    %v1464 = vpop.f32.mrf.mxu0
    %v1465 = vadd.f32 %v1414, %v1464
    %v1466 = vpop.f32.mrf.mxu0
    %v1467 = vpop.f32.mrf.mxu0
    %v1468 = vadd.f32 %v1414, %v1467
    %v1469 = vpop.f32.mrf.mxu0
    %1470 = vdwg.mxu0
    %v1471 = vadd.f32 %v991, %v1465
    %v1472 = vadd.f32 %v992, %v1468
    %v1473 = vsel %vm258, %v1471, 0.0
    %1474 = vadd.xlane.f32.xlu0 %v1473
    %v1475 = vpop.xlane.xlu0 %1474
    %v1476 = vsel %vm258, %v1472, 0.0
    %1477 = vadd.xlane.f32.xlu0 %v1476
    %v1478 = vpop.xlane.xlu0 %1477
    %v1479 = vmul.f32 %v1475, %v265
    %v1480 = vmul.f32 %v1478, %v265
    %v1481 = vsub.f32 %v1471, %v1479
    %v1482 = vsub.f32 %v1472, %v1480
    %v1483 = vmul.f32 %v1481, %v1481
    %v1484 = vmul.f32 %v1482, %v1482
    %v1485 = vsel %vm258, %v1483, 0.0
    %1486 = vadd.xlane.f32.xlu0 %v1485
    %v1487 = vpop.xlane.xlu0 %1486
    %v1488 = vsel %vm258, %v1484, 0.0
    %1489 = vadd.xlane.f32.xlu0 %v1488
    %v1490 = vpop.xlane.xlu0 %1489
    %v1491 = vmul.f32 %v1487, %v265
    %v1492 = vmul.f32 %v1490, %v265
    %v1493 = vadd.f32 %v1491, 1e-08
    %v1494 = vadd.f32 %v1492, 1e-08
    %v1495 = vrsqrt.pop %v1493
    %v1496 = vrsqrt.pop %v1494
    %v1497 = vmul.f32 %v1481, %v1495
    %v1498 = vmul.f32 %v1482, %v1496
    %v1499 = vlaneseq
    %v1500 = vshrl.u32 %v1499, 7
    %v1501 = vsub.s32 6, %v1500
    %v1502 = vrot.slane %v953, %v1501
    %v1503 = vmul.f32 %v1497, %v1502
    %v1504 = vmul.f32 %v1498, %v1502
    %v1505 = vlaneseq
    %v1506 = vshrl.u32 %v1505, 7
    %v1507 = vsub.s32 7, %v1506
    %v1508 = vrot.slane %v953, %v1507
    %v1509 = vadd.f32 %v1503, %v1508
    %v1510 = vadd.f32 %v1504, %v1508
    %s1511 = scalar_lea.vmem [#allocation7], 16
    %v1512 = vld [vmem:[%s1511] sm:$0xf]
    %v1513 = vld [vmem:[%s1511 + $0x4] sm:$0xf]
    %v1514 = vld [vmem:[%s1511 + $0x8] sm:$0xf]
    %v1515 = vld [vmem:[%s1511 + $0xc] sm:$0xf]
    %v1516 = vpack.c.bf16 %v1510, %v1509
    %v1517 = vlaneseq
    %v1518 = vshrl.u32 %v1517, 7
    %v1519 = vsub.s32 0, %v1518
    %v1520 = vrot.slane %v954, %v1519
    %v1525 = vunpack.c.l.b16 %v1512
    %v1526 = vunpack.c.l.b16 %v1513
    %v1527 = vunpack.c.l.b16 %v1514
    %v1528 = vunpack.c.l.b16 %v1515
    %v1529 = vpack.c.b16 %v1526, %v1525
    %v1530 = vpack.c.b16 %v1528, %v1527
    %v1534 = vsel %vm258, %v1516, 0
    %1536 = vmatprep.subr.bf16.mxu0 0
    %1537 = vmatpush1.bf16.msra.mxu0 0
    %1538 = vmatprep.subr.bf16.mxu0 0
    %1539 = vmatpush1.bf16.msra.mxu0 0
    %1540 = vmatprep.subr.bf16.mxu0 0
    %1541 = vmatpush1.bf16.msra.mxu0 0
    %1542 = vmatprep.subr.bf16.mxu0 0
    %1543 = vmatpush1.bf16.msra.mxu0 0
    %1544 = vmatprep.subr.bf16.mxu0 0
    %1545 = vmatpush1.bf16.msra.mxu0 0
    %1546 = vmatprep.subr.bf16.mxu0 0
    %1547 = vmatpush1.bf16.msra.mxu0 0
    %1548 = vmatprep.subr.bf16.mxu0 0
    %1549 = vmatpush1.bf16.msra.mxu0 %v1530
    %1550 = vmatprep.subr.bf16.mxu0 0
    %1551 = vmatpush1.bf16.msra.mxu0 %v1529
    %1552 = vmatprep.subr.bf16.mxu0 0
    %1553 = vmatpush2.bf16.msra.mxu0 0
    %1554 = vmatprep.subr.bf16.mxu0 0
    %1555 = vmatpush2.bf16.msra.mxu0 0
    %1556 = vmatprep.subr.bf16.mxu0 0
    %1557 = vmatpush2.bf16.msra.mxu0 0
    %1558 = vmatprep.subr.bf16.mxu0 0
    %1559 = vmatpush2.bf16.msra.mxu0 0
    %1560 = vmatprep.subr.bf16.mxu0 0
    %1561 = vmatpush2.bf16.msra.mxu0 0
    %1562 = vmatprep.subr.bf16.mxu0 0
    %1563 = vmatpush2.bf16.msra.mxu0 0
    %1564 = vmatprep.subr.bf16.mxu0 0
    %1565 = vmatpush2.bf16.msra.mxu0 0
    %1566 = vmatprep.subr.bf16.mxu0 0
    %1567 = vmatpush2.bf16.msra.mxu0 0
    %1568 = vmatprep.mubr.bf16.mxu0 0
    %1569 = vmatmul.mubr.bf16.gmra.mxu0 %v1534
    %v1570 = vpop.f32.mrf.mxu0
    %v1571 = vadd.f32 %v1520, %v1570
    %v1572 = vpop.f32.mrf.mxu0
    %v1573 = vpop.f32.mrf.mxu0
    %v1574 = vadd.f32 %v1520, %v1573
    %v1575 = vpop.f32.mrf.mxu0
    %1576 = vdwg.mxu0
    %v1577 = vmax.f32 %v1571, 0.0
    %v1578 = vmax.f32 %v1574, 0.0
    %s1579 = scalar_lea.vmem [#allocation8], 16
    %v1580 = vld [vmem:[%s1579] sm:$0xf]
    %v1581 = vld [vmem:[%s1579 + $0x4] sm:$0xf]
    %v1582 = vld [vmem:[%s1579 + $0x8] sm:$0xf]
    %v1583 = vld [vmem:[%s1579 + $0xc] sm:$0xf]
    %v1584 = vpack.c.bf16 %v1578, %v1577
    %v1585 = vlaneseq
    %v1586 = vshrl.u32 %v1585, 7
    %v1587 = vsub.s32 1, %v1586
    %v1588 = vrot.slane %v954, %v1587
    %v1593 = vunpack.c.l.b16 %v1580
    %v1594 = vunpack.c.l.b16 %v1581
    %v1595 = vunpack.c.l.b16 %v1582
    %v1596 = vunpack.c.l.b16 %v1583
    %v1597 = vpack.c.b16 %v1594, %v1593
    %v1598 = vpack.c.b16 %v1596, %v1595
    %v1602 = vsel %vm258, %v1584, 0
    %1604 = vmatprep.subr.bf16.mxu0 0
    %1605 = vmatpush1.bf16.msra.mxu0 0
    %1606 = vmatprep.subr.bf16.mxu0 0
    %1607 = vmatpush1.bf16.msra.mxu0 0
    %1608 = vmatprep.subr.bf16.mxu0 0
    %1609 = vmatpush1.bf16.msra.mxu0 0
    %1610 = vmatprep.subr.bf16.mxu0 0
    %1611 = vmatpush1.bf16.msra.mxu0 0
    %1612 = vmatprep.subr.bf16.mxu0 0
    %1613 = vmatpush1.bf16.msra.mxu0 0
    %1614 = vmatprep.subr.bf16.mxu0 0
    %1615 = vmatpush1.bf16.msra.mxu0 0
    %1616 = vmatprep.subr.bf16.mxu0 0
    %1617 = vmatpush1.bf16.msra.mxu0 %v1598
    %1618 = vmatprep.subr.bf16.mxu0 0
    %1619 = vmatpush1.bf16.msra.mxu0 %v1597
    %1620 = vmatprep.subr.bf16.mxu0 0
    %1621 = vmatpush2.bf16.msra.mxu0 0
    %1622 = vmatprep.subr.bf16.mxu0 0
    %1623 = vmatpush2.bf16.msra.mxu0 0
    %1624 = vmatprep.subr.bf16.mxu0 0
    %1625 = vmatpush2.bf16.msra.mxu0 0
    %1626 = vmatprep.subr.bf16.mxu0 0
    %1627 = vmatpush2.bf16.msra.mxu0 0
    %1628 = vmatprep.subr.bf16.mxu0 0
    %1629 = vmatpush2.bf16.msra.mxu0 0
    %1630 = vmatprep.subr.bf16.mxu0 0
    %1631 = vmatpush2.bf16.msra.mxu0 0
    %1632 = vmatprep.subr.bf16.mxu0 0
    %1633 = vmatpush2.bf16.msra.mxu0 0
    %1634 = vmatprep.subr.bf16.mxu0 0
    %1635 = vmatpush2.bf16.msra.mxu0 0
    %1636 = vmatprep.mubr.bf16.mxu0 0
    %1637 = vmatmul.mubr.bf16.gmra.mxu0 %v1602
    %v1638 = vpop.f32.mrf.mxu0
    %v1639 = vadd.f32 %v1588, %v1638
    %v1640 = vpop.f32.mrf.mxu0
    %v1641 = vpop.f32.mrf.mxu0
    %v1642 = vadd.f32 %v1588, %v1641
    %v1643 = vpop.f32.mrf.mxu0
    %1644 = vdwg.mxu0
    %v1645 = vadd.f32 %v1509, %v1639
    %v1646 = vadd.f32 %v1510, %v1642
    %v1647 = vmul.f32 %v1645, %v249
    %v1648 = vmul.f32 %v1646, %v250
    %v1649 = vld [vmem:[%s13] sm:$0x3]
    %v1652 = vrot.slane %v1648, 7
    %vm1655 = vcmask 261127
    %v1656 = vsel %vm1655, %v1647, 0.0
    %1657 = vadd.xlane.f32.xlu0 %v1656
    %v1658 = vpop.xlane.xlu0 %1657
    %vm1659 = vcmask 253952
    %v1660 = vsel %vm1659, %v1652, 0.0
    %1661 = vadd.xlane.f32.xlu0 %v1660
    %v1662 = vpop.xlane.xlu0 %1661
    %v1663 = vmul.f32 %v1658, %v265
    %v1664 = vmul.f32 %v1662, %v265
    %v1667 = vrot.slane %v1664, 1
    %v1670 = vsub.f32 %v1647, %v1663
    %v1671 = vsub.f32 %v1648, %v1667
    %v1672 = vmul.f32 %v1670, %v1670
    %v1673 = vmul.f32 %v1671, %v1671
    %v1676 = vrot.slane %v1673, 7
    %v1679 = vsel %vm1655, %v1672, 0.0
    %1680 = vadd.xlane.f32.xlu0 %v1679
    %v1681 = vpop.xlane.xlu0 %1680
    %v1682 = vsel %vm1659, %v1676, 0.0
    %1683 = vadd.xlane.f32.xlu0 %v1682
    %v1684 = vpop.xlane.xlu0 %1683
    %v1685 = vmul.f32 %v1681, %v265
    %v1686 = vmul.f32 %v1684, %v265
    %v1687 = vadd.f32 %v1685, 1e-08
    %v1688 = vadd.f32 %v1686, 1e-08
    %v1689 = vrsqrt.pop %v1687
    %v1690 = vrsqrt.pop %v1688
    %v1693 = vrot.slane %v1690, 1
    %v1696 = vmul.f32 %v1670, %v1689
    %v1697 = vmul.f32 %v1671, %v1693
    %v1698 = vlaneseq
    %v1699 = vshrl.u32 %v1698, 7
    %v1700 = vsub.s32 0, %v1699
    %v1701 = vrot.slane %v1649, %v1700
    %v1702 = vmul.f32 %v1696, %v1701
    %v1703 = vmul.f32 %v1697, %v1701
    %v1704 = vlaneseq
    %v1705 = vshrl.u32 %v1704, 7
    %v1706 = vsub.s32 1, %v1705
    %v1707 = vrot.slane %v1649, %v1706
    %v1708 = vadd.f32 %v1702, %v1707
    %v1709 = vadd.f32 %v1703, %v1707
    %v1710 = vld [vmem:[#allocation2] sm:$0xf]
    %v1711 = vld [vmem:[#allocation2 + $0x4] sm:$0xf]
    %v1712 = vld [vmem:[#allocation2 + $0x8] sm:$0xf]
    %v1713 = vld [vmem:[#allocation2 + $0xc] sm:$0xf]
    %v1714 = vpack.c.bf16 %v1708, %v1708
    %v1715 = vpack.c.bf16 %v1709, %v1709
    %v1716 = vld [vmem:[#allocation5] sm:$0x1]
    %v1718 = vlaneseq
    %v1719 = vshrl.u32 %v1718, 7
    %v1720 = vsub.s32 0, %v1719
    %v1721 = vrot.slane %v1716, %v1720
    %v1725 = vunpack.c.l.b16 %v1714
    %v1726 = vunpack.c.l.b16 %v1715
    %v1727 = vrot.slane %v1725, 7
    %v1728 = vrot.slane %v1726, 6
    %vm1729 = vcmask 1041409
    %v1730 = vsel %vm1729, %v1728, %v1727
    %v1731 = vpack.c.b16 %v1730, %v1730
    %v1736 = vunpack.c.l.b16 %v1710
    %v1737 = vunpack.c.l.b16 %v1711
    %v1738 = vunpack.c.l.b16 %v1712
    %v1739 = vunpack.c.l.b16 %v1713
    %v1740 = vpack.c.b16 %v1737, %v1736
    %v1741 = vpack.c.b16 %v1739, %v1738
    %v1745 = vsel %vm258, %v1731, 0
    %1747 = vmatprep.subr.bf16.mxu0 0
    %1748 = vmatpush1.bf16.msra.mxu0 0
    %1749 = vmatprep.subr.bf16.mxu0 0
    %1750 = vmatpush1.bf16.msra.mxu0 0
    %1751 = vmatprep.subr.bf16.mxu0 0
    %1752 = vmatpush1.bf16.msra.mxu0 0
    %1753 = vmatprep.subr.bf16.mxu0 0
    %1754 = vmatpush1.bf16.msra.mxu0 0
    %1755 = vmatprep.subr.bf16.mxu0 0
    %1756 = vmatpush1.bf16.msra.mxu0 0
    %1757 = vmatprep.subr.bf16.mxu0 0
    %1758 = vmatpush1.bf16.msra.mxu0 0
    %1759 = vmatprep.subr.bf16.mxu0 0
    %1760 = vmatpush1.bf16.msra.mxu0 %v1741
    %1761 = vmatprep.subr.bf16.mxu0 0
    %1762 = vmatpush1.bf16.msra.mxu0 %v1740
    %1763 = vmatprep.subr.bf16.mxu0 0
    %1764 = vmatpush2.bf16.msra.mxu0 0
    %1765 = vmatprep.subr.bf16.mxu0 0
    %1766 = vmatpush2.bf16.msra.mxu0 0
    %1767 = vmatprep.subr.bf16.mxu0 0
    %1768 = vmatpush2.bf16.msra.mxu0 0
    %1769 = vmatprep.subr.bf16.mxu0 0
    %1770 = vmatpush2.bf16.msra.mxu0 0
    %1771 = vmatprep.subr.bf16.mxu0 0
    %1772 = vmatpush2.bf16.msra.mxu0 0
    %1773 = vmatprep.subr.bf16.mxu0 0
    %1774 = vmatpush2.bf16.msra.mxu0 0
    %1775 = vmatprep.subr.bf16.mxu0 0
    %1776 = vmatpush2.bf16.msra.mxu0 0
    %1777 = vmatprep.subr.bf16.mxu0 0
    %1778 = vmatpush2.bf16.msra.mxu0 0
    %1779 = vmatprep.mubr.bf16.mxu0 0
    %1780 = vmatmul.mubr.bf16.gmra.mxu0 %v1745
    %v1781 = vpop.f32.mrf.mxu0
    %v1782 = vadd.f32 %v1721, %v1781
    %v1783 = vpop.f32.mrf.mxu0
    %v1784 = vpop.f32.mrf.mxu0
    %v1785 = vpop.f32.mrf.mxu0
    %1786 = vdwg.mxu0
    %1787 = vst [vmem:[#allocation11] sm:$0x3] %v1782
    %v1788 = vld [vmem:[%s1] sm:$0x3]
    %1789 = vset.pattern.permute.xlu0 0
    %1790 = vperm.xlu0 %1789, %v1788
    %v1791 = vpop.permute.xlu0 %1790
    %vm1792 = vcmp.eq.s32.totalorder %v120, %v1791
    %v1793 = vsel %vm1792, 1, 0
    %v1794 = vcvt.s32.f32 %v1793
    %vm1795 = vcmask 1041408
    %v1796 = vsel %vm1795, %v1782, -inf
    %1797 = vmax.xlane.f32.xlu0 %v1796
    %v1798 = vpop.xlane.xlu0 %1797
    %v1799 = vsub.f32 %v1782, %v1798
    %v1800 = vmul.f32 %v1799, 1.442695
    %v1801 = vpow.pop %v1800
    %v1802 = vsel %vm1795, %v1801, 0.0
    %1803 = vadd.xlane.f32.xlu0 %v1802
    %v1804 = vpop.xlane.xlu0 %1803
    %v1805 = vlog2.pop %v1804
    %v1806 = vmul.f32 %v1805, 0.6931472
    %v1807 = vadd.f32 %v1798, %v1806
    %v1808 = vmul.f32 %v1782, %v1794
    %v1809 = vsel %vm1795, %v1808, 0.0
    %1810 = vadd.xlane.f32.xlu0 %v1809
    %v1811 = vpop.xlane.xlu0 %1810
    %v1812 = vsub.f32 %v1807, %v1811
    %vm1813 = vcmask 1024
    %1814 = vst.msk [vmem:[%s15] sm:$0x3] %vm1813, %v1812
    // Predicated region
    $region78: #{sasrec_forward.1} parent=1 // pred_check
      _
    $region79: #{sasrec_forward.1} parent=1 // pred_check_branch
      %1816 = sbr.rel (0) target = $region81
    $region80: #{sasrec_forward.1} parent=1 // pred_region
      %s1818 = ssub.s32 32, 32
      %1819 = vsyncadd [#allocation4], %s1818
      %s1821 = sshll.u32 [#allocation11], 4
      %s1822 = int_to_ptr.vmem [resolvable:$true] %s1821
      %1824 = dma.vmem_to_hbm [thread:$0]  %s1822, 32, %s14, [#allocation4]
    $region81: #{sasrec_forward.1} parent=1 // pred_fallthru
      _
    // Predicated region
    $region82: #{sasrec_forward.1} parent=1 // pred_check
      _
    $region83: #{sasrec_forward.1} parent=1 // pred_check_branch
      %1826 = sbr.rel (0) target = $region85
    $region84: #{sasrec_forward.1} parent=1 // pred_region
      _
    $region85: #{sasrec_forward.1} parent=1 // pred_fallthru
      _
    // Predicated region
    $region86: #{sasrec_forward.1} parent=1 // pred_check
      _
    $region87: #{sasrec_forward.1} parent=1 // pred_check_branch
      %1828 = sbr.rel (0) target = $region89
    $region88: #{sasrec_forward.1} parent=1 // pred_region
      %1829 = dma.done [#allocation4], 32
    $region89: #{sasrec_forward.1} parent=1 // pred_fallthru
      _
    // Predicated region
    $region90: #{sasrec_forward.1} parent=1 // pred_check
      _
    $region91: #{sasrec_forward.1} parent=1 // pred_check_branch
      %1831 = sbr.rel (0) target = $region93
    $region92: #{sasrec_forward.1} parent=1 // pred_region
      _
    $region93: #{sasrec_forward.1} parent=1 // pred_fallthru
      _
    %1832 = vsyncpa [#allocation3], 1
    %1833 = vsyncpa [#allocation6], 1
    %1834 = vsyncpa [#allocation9], 1
    %1835 = vsyncpa [#allocation4], 1

</llo_original>
